<compile_context>
chip_gen: v6e
topology: v6e:2x2x1
jax: 0.10.0
libtpu: 0.0.40
codegen_flags: <defaults>
</compile_context>

<pallas_src>
import functools

import jax
import jax.numpy as jnp
import numpy as np
from jax.experimental import pallas as pl
from jax.experimental.pallas import tpu as pltpu


def conv_bn_relu_kernel(xp_ref, w3_ref, masks_ref, gamma_ref, beta_ref, o_ref,
                        *, W, eps=1e-5):
    # xp_ref   : (Cin, L + 2*(W+1)) bf16   halo-padded flat activation, L = N*H*W
    # w3_ref   : (9, Cout, Cin)     bf16   w3[dy*3+dx] = weight[:, :, dy, dx]
    # masks_ref: (9, 1, L)          bf16   combined row+col validity mask per tap
    # gamma_ref: (Cout, 1) f32 ; beta_ref: (Cout, 1) f32
    # o_ref    : (Cout, L)          f32    lane-dense output slab
    Cout, L = o_ref.shape

    # ---- im2col taps as register values + 9 accumulated MXU dots ----------
    acc = jnp.zeros((Cout, L), jnp.float32)
    for dy in range(3):
        for dx in range(3):
            tap = dy * 3 + dx
            # Window read at static offset; out-of-image positions are either
            # in the zero halo or in a neighbouring image -> killed by mask.
            sl = xp_ref[:, pl.ds(dy * W + dx, L)]           # (Cin, L) bf16
            if tap != 4:                                    # center tap: no mask
                sl = sl * masks_ref[tap]                    # one combined mask
            acc = acc + jnp.dot(w3_ref[tap], sl,
                                preferred_element_type=jnp.float32)

    # ---- BatchNorm2d (training-mode biased batch stats, single pass) + ReLU
    # Conv bias omitted: exactly cancelled by the mean subtraction below.
    inv_cnt = 1.0 / float(L)
    s1 = jnp.sum(acc, axis=1, keepdims=True)                # (Cout, 1)
    s2 = jnp.sum(acc * acc, axis=1, keepdims=True)
    mean = s1 * inv_cnt
    var = s2 * inv_cnt - mean * mean
    inv_std = jax.lax.rsqrt(var + eps)
    scale = gamma_ref[...] * inv_std                        # hoisted per-channel
    shift = beta_ref[...] - mean * scale
    o_ref[...] = jnp.maximum(acc * scale + shift, 0.0)      # lane-dense f32 store


@jax.jit
def conv_forward(x_nchw, weight_oihw, bias, gamma, beta):
    """Conv2d(3x3, padding=1) -> BatchNorm2d(batch stats) -> ReLU.

    x_nchw: (N, Cin, H, W) f32 -> (N, Cout, H, W) f32.
    `bias` is accepted for interface parity with nn.Conv2d but unused: a
    per-channel constant before BatchNorm (batch statistics) is cancelled by
    the mean subtraction, so the output is identical.
    """
    del bias
    # TODO(synk): BatchNorm2d's training-mode running_mean/running_var buffer
    # updates (a stateful side effect) are not emulated; output-only parity.
    N, Cin, H, W = x_nchw.shape
    Cout = weight_oihw.shape[0]
    HW = H * W
    L = N * HW

    # Lane-dense merged-batch slab, halo-padded by W+1 zeros on each end.
    x_flat = jnp.transpose(x_nchw, (1, 0, 2, 3)).reshape(Cin, L)
    x_pad = jnp.pad(x_flat, ((0, 0), (W + 1, W + 1))).astype(jnp.bfloat16)

    # Per-tap weight slices (9, Cout, Cin): w3[dy*3+dx, o, c] = weight[o, c, dy, dx].
    w3 = jnp.transpose(weight_oihw, (2, 3, 0, 1)).reshape(
        9, Cout, Cin).astype(jnp.bfloat16)

    # Precomputed combined row+col edge masks, one per tap (center = all ones).
    p = np.arange(L, dtype=np.int64)
    h = (p % HW) // W
    w = p % W
    masks_np = np.ones((9, L), np.float32)
    for dy in range(3):
        for dx in range(3):
            valid = np.ones(L, dtype=bool)
            if dy == 0:
                valid &= h >= 1
            if dy == 2:
                valid &= h <= H - 2
            if dx == 0:
                valid &= w >= 1
            if dx == 2:
                valid &= w <= W - 2
            masks_np[dy * 3 + dx] = valid.astype(np.float32)
    masks = jnp.asarray(masks_np.reshape(9, 1, L), dtype=jnp.bfloat16)

    vmem = pl.BlockSpec(memory_space=pltpu.MemorySpace.VMEM)
    out_flat = pl.pallas_call(
        functools.partial(conv_bn_relu_kernel, W=W),
        out_shape=jax.ShapeDtypeStruct((Cout, L), jnp.float32),
        in_specs=[vmem] * 5,
        out_specs=vmem,
    )(x_pad, w3, masks,
      gamma.reshape(Cout, 1).astype(jnp.float32),
      beta.reshape(Cout, 1).astype(jnp.float32))

    # (Cout, N*HW) -> (N, Cout, H, W); tiny XLA transpose outside the kernel.
    return jnp.transpose(out_flat.reshape(Cout, N, H, W), (1, 0, 2, 3))


def reference_forward(x, weight, bias, gamma, beta, eps=1e-5):
    """Pure-JAX f32 reference of the PyTorch module (training-mode BN)."""
    y = jax.lax.conv_general_dilated(
        x, weight, window_strides=(1, 1), padding=((1, 1), (1, 1)),
        dimension_numbers=("NCHW", "OIHW", "NCHW"))
    y = y + bias.reshape(1, -1, 1, 1)
    mean = jnp.mean(y, axis=(0, 2, 3), keepdims=True)
    var = jnp.mean(jnp.square(y - mean), axis=(0, 2, 3), keepdims=True)
    y = (y - mean) * jax.lax.rsqrt(var + eps)
    y = y * gamma.reshape(1, -1, 1, 1) + beta.reshape(1, -1, 1, 1)
    return jnp.maximum(y, 0.0)


if __name__ == "__main__":
    key = jax.random.PRNGKey(0)
    k_x, k_w, k_b = jax.random.split(key, 3)

    N, Cin, Cout, H, W = 2, 4, 8, 16, 16

    x = jax.random.normal(k_x, (N, Cin, H, W), dtype=jnp.float32)

    # PyTorch-style init: uniform(-1/sqrt(fan_in), 1/sqrt(fan_in)).
    fan_in = Cin * 3 * 3
    bound = 1.0 / float(np.sqrt(fan_in))
    weight = jax.random.uniform(k_w, (Cout, Cin, 3, 3), jnp.float32,
                                minval=-bound, maxval=bound)   # OIHW (PyTorch)
    bias = jax.random.uniform(k_b, (Cout,), jnp.float32,
                              minval=-bound, maxval=bound)
    gamma = jnp.ones((Cout,), jnp.float32)   # BatchNorm2d default weight
    beta = jnp.zeros((Cout,), jnp.float32)   # BatchNorm2d default bias

    out = conv_forward(x, weight, bias, gamma, beta)
    jax.block_until_ready(out)

    ref = reference_forward(x, weight, bias, gamma, beta)
    max_err = float(jnp.max(jnp.abs(out - ref)))

    assert out.shape == (N, Cout, H, W)
    assert bool(jnp.all(jnp.isfinite(out)))
    assert bool(jnp.all(out >= 0.0))                 # ReLU output
    assert max_err < 1e-1, f"max |kernel - reference| = {max_err}"  # bf16 MXU tol
    print("KERNEL_OK")
</pallas_src>

<mosaic_0001>
module attributes {stable_mosaic.version = 11 : i64} {
  func.func @conv_bn_relu_kernel(%arg0: memref<4x546xbf16, #tpu.memory_space<vmem>>, %arg1: memref<9x8x4xbf16, #tpu.memory_space<vmem>>, %arg2: memref<9x1x512xbf16, #tpu.memory_space<vmem>>, %arg3: memref<8x1xf32, #tpu.memory_space<vmem>>, %arg4: memref<8x1xf32, #tpu.memory_space<vmem>>, %arg5: memref<8x512xf32, #tpu.memory_space<vmem>>) attributes {dimension_semantics = [], scalar_prefetch = 0 : i64, scratch_operands = 0 : i64, tpu.core_type = #tpu.core_type<tc>} {
    %cst = arith.constant 0.000000e+00 : f32
    %0 = vector.broadcast %cst : f32 to vector<8x512xf32>
    %c0 = arith.constant 0 : index
    %c0_0 = arith.constant 0 : index
    %1 = vector.load %arg0[%c0, %c0_0] : memref<4x546xbf16, #tpu.memory_space<vmem>>, vector<4x512xbf16>
    %c0_1 = arith.constant 0 : index
    %c0_2 = arith.constant 0 : index
    %c0_3 = arith.constant 0 : index
    %2 = vector.load %arg2[%c0_1, %c0_2, %c0_3] : memref<9x1x512xbf16, #tpu.memory_space<vmem>>, vector<1x1x512xbf16>
    %3 = vector.shape_cast %2 : vector<1x1x512xbf16> to vector<1x512xbf16>
    %4 = vector.broadcast %3 : vector<1x512xbf16> to vector<4x512xbf16>
    %5 = arith.mulf %1, %4 : vector<4x512xbf16>
    %c0_4 = arith.constant 0 : index
    %c0_5 = arith.constant 0 : index
    %c0_6 = arith.constant 0 : index
    %6 = vector.load %arg1[%c0_4, %c0_5, %c0_6] : memref<9x8x4xbf16, #tpu.memory_space<vmem>>, vector<1x8x4xbf16>
    %7 = vector.shape_cast %6 : vector<1x8x4xbf16> to vector<8x4xbf16>
    %cst_7 = arith.constant dense<0.000000e+00> : vector<8x512xf32>
    %8 = tpu.matmul %7, %5, %cst_7 {dimension_numbers = #tpu.dot_dimension_numbers<[1], [0], [0], [1], [0, 0, 1, 1], [], []>} : vector<8x4xbf16>, vector<4x512xbf16>, vector<8x512xf32> -> vector<8x512xf32>
    %9 = arith.addf %0, %8 : vector<8x512xf32>
    %c0_8 = arith.constant 0 : index
    %c1 = arith.constant 1 : index
    %10 = vector.load %arg0[%c0_8, %c1] : memref<4x546xbf16, #tpu.memory_space<vmem>>, vector<4x512xbf16>
    %c1_9 = arith.constant 1 : index
    %c0_10 = arith.constant 0 : index
    %c0_11 = arith.constant 0 : index
    %11 = vector.load %arg2[%c1_9, %c0_10, %c0_11] : memref<9x1x512xbf16, #tpu.memory_space<vmem>>, vector<1x1x512xbf16>
    %12 = vector.shape_cast %11 : vector<1x1x512xbf16> to vector<1x512xbf16>
    %13 = vector.broadcast %12 : vector<1x512xbf16> to vector<4x512xbf16>
    %14 = arith.mulf %10, %13 : vector<4x512xbf16>
    %c1_12 = arith.constant 1 : index
    %c0_13 = arith.constant 0 : index
    %c0_14 = arith.constant 0 : index
    %15 = vector.load %arg1[%c1_12, %c0_13, %c0_14] : memref<9x8x4xbf16, #tpu.memory_space<vmem>>, vector<1x8x4xbf16>
    %16 = vector.shape_cast %15 : vector<1x8x4xbf16> to vector<8x4xbf16>
    %cst_15 = arith.constant dense<0.000000e+00> : vector<8x512xf32>
    %17 = tpu.matmul %16, %14, %cst_15 {dimension_numbers = #tpu.dot_dimension_numbers<[1], [0], [0], [1], [0, 0, 1, 1], [], []>} : vector<8x4xbf16>, vector<4x512xbf16>, vector<8x512xf32> -> vector<8x512xf32>
    %18 = arith.addf %9, %17 : vector<8x512xf32>
    %c0_16 = arith.constant 0 : index
    %c2 = arith.constant 2 : index
    %19 = vector.load %arg0[%c0_16, %c2] : memref<4x546xbf16, #tpu.memory_space<vmem>>, vector<4x512xbf16>
    %c2_17 = arith.constant 2 : index
    %c0_18 = arith.constant 0 : index
    %c0_19 = arith.constant 0 : index
    %20 = vector.load %arg2[%c2_17, %c0_18, %c0_19] : memref<9x1x512xbf16, #tpu.memory_space<vmem>>, vector<1x1x512xbf16>
    %21 = vector.shape_cast %20 : vector<1x1x512xbf16> to vector<1x512xbf16>
    %22 = vector.broadcast %21 : vector<1x512xbf16> to vector<4x512xbf16>
    %23 = arith.mulf %19, %22 : vector<4x512xbf16>
    %c2_20 = arith.constant 2 : index
    %c0_21 = arith.constant 0 : index
    %c0_22 = arith.constant 0 : index
    %24 = vector.load %arg1[%c2_20, %c0_21, %c0_22] : memref<9x8x4xbf16, #tpu.memory_space<vmem>>, vector<1x8x4xbf16>
    %25 = vector.shape_cast %24 : vector<1x8x4xbf16> to vector<8x4xbf16>
    %cst_23 = arith.constant dense<0.000000e+00> : vector<8x512xf32>
    %26 = tpu.matmul %25, %23, %cst_23 {dimension_numbers = #tpu.dot_dimension_numbers<[1], [0], [0], [1], [0, 0, 1, 1], [], []>} : vector<8x4xbf16>, vector<4x512xbf16>, vector<8x512xf32> -> vector<8x512xf32>
    %27 = arith.addf %18, %26 : vector<8x512xf32>
    %c0_24 = arith.constant 0 : index
    %c16 = arith.constant 16 : index
    %28 = vector.load %arg0[%c0_24, %c16] : memref<4x546xbf16, #tpu.memory_space<vmem>>, vector<4x512xbf16>
    %c3 = arith.constant 3 : index
    %c0_25 = arith.constant 0 : index
    %c0_26 = arith.constant 0 : index
    %29 = vector.load %arg2[%c3, %c0_25, %c0_26] : memref<9x1x512xbf16, #tpu.memory_space<vmem>>, vector<1x1x512xbf16>
    %30 = vector.shape_cast %29 : vector<1x1x512xbf16> to vector<1x512xbf16>
    %31 = vector.broadcast %30 : vector<1x512xbf16> to vector<4x512xbf16>
    %32 = arith.mulf %28, %31 : vector<4x512xbf16>
    %c3_27 = arith.constant 3 : index
    %c0_28 = arith.constant 0 : index
    %c0_29 = arith.constant 0 : index
    %33 = vector.load %arg1[%c3_27, %c0_28, %c0_29] : memref<9x8x4xbf16, #tpu.memory_space<vmem>>, vector<1x8x4xbf16>
    %34 = vector.shape_cast %33 : vector<1x8x4xbf16> to vector<8x4xbf16>
    %cst_30 = arith.constant dense<0.000000e+00> : vector<8x512xf32>
    %35 = tpu.matmul %34, %32, %cst_30 {dimension_numbers = #tpu.dot_dimension_numbers<[1], [0], [0], [1], [0, 0, 1, 1], [], []>} : vector<8x4xbf16>, vector<4x512xbf16>, vector<8x512xf32> -> vector<8x512xf32>
    %36 = arith.addf %27, %35 : vector<8x512xf32>
    %c0_31 = arith.constant 0 : index
    %c17 = arith.constant 17 : index
    %37 = vector.load %arg0[%c0_31, %c17] : memref<4x546xbf16, #tpu.memory_space<vmem>>, vector<4x512xbf16>
    %c4 = arith.constant 4 : index
    %c0_32 = arith.constant 0 : index
    %c0_33 = arith.constant 0 : index
    %38 = vector.load %arg1[%c4, %c0_32, %c0_33] : memref<9x8x4xbf16, #tpu.memory_space<vmem>>, vector<1x8x4xbf16>
    %39 = vector.shape_cast %38 : vector<1x8x4xbf16> to vector<8x4xbf16>
    %cst_34 = arith.constant dense<0.000000e+00> : vector<8x512xf32>
    %40 = tpu.matmul %39, %37, %cst_34 {dimension_numbers = #tpu.dot_dimension_numbers<[1], [0], [0], [1], [0, 0, 1, 1], [], []>} : vector<8x4xbf16>, vector<4x512xbf16>, vector<8x512xf32> -> vector<8x512xf32>
    %41 = arith.addf %36, %40 : vector<8x512xf32>
    %c0_35 = arith.constant 0 : index
    %c18 = arith.constant 18 : index
    %42 = vector.load %arg0[%c0_35, %c18] : memref<4x546xbf16, #tpu.memory_space<vmem>>, vector<4x512xbf16>
    %c5 = arith.constant 5 : index
    %c0_36 = arith.constant 0 : index
    %c0_37 = arith.constant 0 : index
    %43 = vector.load %arg2[%c5, %c0_36, %c0_37] : memref<9x1x512xbf16, #tpu.memory_space<vmem>>, vector<1x1x512xbf16>
    %44 = vector.shape_cast %43 : vector<1x1x512xbf16> to vector<1x512xbf16>
    %45 = vector.broadcast %44 : vector<1x512xbf16> to vector<4x512xbf16>
    %46 = arith.mulf %42, %45 : vector<4x512xbf16>
    %c5_38 = arith.constant 5 : index
    %c0_39 = arith.constant 0 : index
    %c0_40 = arith.constant 0 : index
    %47 = vector.load %arg1[%c5_38, %c0_39, %c0_40] : memref<9x8x4xbf16, #tpu.memory_space<vmem>>, vector<1x8x4xbf16>
    %48 = vector.shape_cast %47 : vector<1x8x4xbf16> to vector<8x4xbf16>
    %cst_41 = arith.constant dense<0.000000e+00> : vector<8x512xf32>
    %49 = tpu.matmul %48, %46, %cst_41 {dimension_numbers = #tpu.dot_dimension_numbers<[1], [0], [0], [1], [0, 0, 1, 1], [], []>} : vector<8x4xbf16>, vector<4x512xbf16>, vector<8x512xf32> -> vector<8x512xf32>
    %50 = arith.addf %41, %49 : vector<8x512xf32>
    %c0_42 = arith.constant 0 : index
    %c32 = arith.constant 32 : index
    %51 = vector.load %arg0[%c0_42, %c32] : memref<4x546xbf16, #tpu.memory_space<vmem>>, vector<4x512xbf16>
    %c6 = arith.constant 6 : index
    %c0_43 = arith.constant 0 : index
    %c0_44 = arith.constant 0 : index
    %52 = vector.load %arg2[%c6, %c0_43, %c0_44] : memref<9x1x512xbf16, #tpu.memory_space<vmem>>, vector<1x1x512xbf16>
    %53 = vector.shape_cast %52 : vector<1x1x512xbf16> to vector<1x512xbf16>
    %54 = vector.broadcast %53 : vector<1x512xbf16> to vector<4x512xbf16>
    %55 = arith.mulf %51, %54 : vector<4x512xbf16>
    %c6_45 = arith.constant 6 : index
    %c0_46 = arith.constant 0 : index
    %c0_47 = arith.constant 0 : index
    %56 = vector.load %arg1[%c6_45, %c0_46, %c0_47] : memref<9x8x4xbf16, #tpu.memory_space<vmem>>, vector<1x8x4xbf16>
    %57 = vector.shape_cast %56 : vector<1x8x4xbf16> to vector<8x4xbf16>
    %cst_48 = arith.constant dense<0.000000e+00> : vector<8x512xf32>
    %58 = tpu.matmul %57, %55, %cst_48 {dimension_numbers = #tpu.dot_dimension_numbers<[1], [0], [0], [1], [0, 0, 1, 1], [], []>} : vector<8x4xbf16>, vector<4x512xbf16>, vector<8x512xf32> -> vector<8x512xf32>
    %59 = arith.addf %50, %58 : vector<8x512xf32>
    %c0_49 = arith.constant 0 : index
    %c33 = arith.constant 33 : index
    %60 = vector.load %arg0[%c0_49, %c33] : memref<4x546xbf16, #tpu.memory_space<vmem>>, vector<4x512xbf16>
    %c7 = arith.constant 7 : index
    %c0_50 = arith.constant 0 : index
    %c0_51 = arith.constant 0 : index
    %61 = vector.load %arg2[%c7, %c0_50, %c0_51] : memref<9x1x512xbf16, #tpu.memory_space<vmem>>, vector<1x1x512xbf16>
    %62 = vector.shape_cast %61 : vector<1x1x512xbf16> to vector<1x512xbf16>
    %63 = vector.broadcast %62 : vector<1x512xbf16> to vector<4x512xbf16>
    %64 = arith.mulf %60, %63 : vector<4x512xbf16>
    %c7_52 = arith.constant 7 : index
    %c0_53 = arith.constant 0 : index
    %c0_54 = arith.constant 0 : index
    %65 = vector.load %arg1[%c7_52, %c0_53, %c0_54] : memref<9x8x4xbf16, #tpu.memory_space<vmem>>, vector<1x8x4xbf16>
    %66 = vector.shape_cast %65 : vector<1x8x4xbf16> to vector<8x4xbf16>
    %cst_55 = arith.constant dense<0.000000e+00> : vector<8x512xf32>
    %67 = tpu.matmul %66, %64, %cst_55 {dimension_numbers = #tpu.dot_dimension_numbers<[1], [0], [0], [1], [0, 0, 1, 1], [], []>} : vector<8x4xbf16>, vector<4x512xbf16>, vector<8x512xf32> -> vector<8x512xf32>
    %68 = arith.addf %59, %67 : vector<8x512xf32>
    %c0_56 = arith.constant 0 : index
    %c34 = arith.constant 34 : index
    %69 = vector.load %arg0[%c0_56, %c34] : memref<4x546xbf16, #tpu.memory_space<vmem>>, vector<4x512xbf16>
    %c8 = arith.constant 8 : index
    %c0_57 = arith.constant 0 : index
    %c0_58 = arith.constant 0 : index
    %70 = vector.load %arg2[%c8, %c0_57, %c0_58] : memref<9x1x512xbf16, #tpu.memory_space<vmem>>, vector<1x1x512xbf16>
    %71 = vector.shape_cast %70 : vector<1x1x512xbf16> to vector<1x512xbf16>
    %72 = vector.broadcast %71 : vector<1x512xbf16> to vector<4x512xbf16>
    %73 = arith.mulf %69, %72 : vector<4x512xbf16>
    %c8_59 = arith.constant 8 : index
    %c0_60 = arith.constant 0 : index
    %c0_61 = arith.constant 0 : index
    %74 = vector.load %arg1[%c8_59, %c0_60, %c0_61] : memref<9x8x4xbf16, #tpu.memory_space<vmem>>, vector<1x8x4xbf16>
    %75 = vector.shape_cast %74 : vector<1x8x4xbf16> to vector<8x4xbf16>
    %cst_62 = arith.constant dense<0.000000e+00> : vector<8x512xf32>
    %76 = tpu.matmul %75, %73, %cst_62 {dimension_numbers = #tpu.dot_dimension_numbers<[1], [0], [0], [1], [0, 0, 1, 1], [], []>} : vector<8x4xbf16>, vector<4x512xbf16>, vector<8x512xf32> -> vector<8x512xf32>
    %77 = arith.addf %68, %76 : vector<8x512xf32>
    %cst_63 = arith.constant dense<0.000000e+00> : vector<8xf32>
    %78 = vector.multi_reduction <add>, %77, %cst_63 [1] : vector<8x512xf32> to vector<8xf32>
    %79 = vector.shape_cast %78 : vector<8xf32> to vector<8x1xf32>
    %80 = arith.mulf %77, %77 : vector<8x512xf32>
    %cst_64 = arith.constant dense<0.000000e+00> : vector<8xf32>
    %81 = vector.multi_reduction <add>, %80, %cst_64 [1] : vector<8x512xf32> to vector<8xf32>
    %82 = vector.shape_cast %81 : vector<8xf32> to vector<8x1xf32>
    %cst_65 = arith.constant 0.001953125 : f32
    %83 = vector.broadcast %cst_65 : f32 to vector<8x1xf32>
    %84 = arith.mulf %79, %83 : vector<8x1xf32>
    %cst_66 = arith.constant 0.001953125 : f32
    %85 = vector.broadcast %cst_66 : f32 to vector<8x1xf32>
    %86 = arith.mulf %82, %85 : vector<8x1xf32>
    %87 = arith.mulf %84, %84 : vector<8x1xf32>
    %88 = arith.subf %86, %87 : vector<8x1xf32>
    %cst_67 = arith.constant 9.99999974E-6 : f32
    %89 = vector.broadcast %cst_67 : f32 to vector<8x1xf32>
    %90 = arith.addf %88, %89 : vector<8x1xf32>
    %91 = math.rsqrt %90 : vector<8x1xf32>
    %c0_68 = arith.constant 0 : index
    %c0_69 = arith.constant 0 : index
    %92 = vector.load %arg3[%c0_68, %c0_69] : memref<8x1xf32, #tpu.memory_space<vmem>>, vector<8x1xf32>
    %93 = arith.mulf %92, %91 : vector<8x1xf32>
    %c0_70 = arith.constant 0 : index
    %c0_71 = arith.constant 0 : index
    %94 = vector.load %arg4[%c0_70, %c0_71] : memref<8x1xf32, #tpu.memory_space<vmem>>, vector<8x1xf32>
    %95 = arith.mulf %84, %93 : vector<8x1xf32>
    %96 = arith.subf %94, %95 : vector<8x1xf32>
    %97 = vector.broadcast %93 : vector<8x1xf32> to vector<8x512xf32>
    %98 = arith.mulf %77, %97 : vector<8x512xf32>
    %99 = vector.broadcast %96 : vector<8x1xf32> to vector<8x512xf32>
    %100 = arith.addf %98, %99 : vector<8x512xf32>
    %cst_72 = arith.constant 0.000000e+00 : f32
    %101 = vector.broadcast %cst_72 : f32 to vector<8x512xf32>
    %102 = arith.maximumf %100, %101 : vector<8x512xf32>
    %c0_73 = arith.constant 0 : index
    %c0_74 = arith.constant 0 : index
    %103 = vector.load %arg5[%c0_73, %c0_74] : memref<8x512xf32, #tpu.memory_space<vmem>>, vector<8x512xf32>
    tpu.vector_store %arg5[%c0_73, %c0_74], %102 {strides = array<i32>} : memref<8x512xf32, #tpu.memory_space<vmem>>, vector<8x512xf32>,
    return
  }
}

</mosaic_0001>

<llo_original>
// kernel: conv_forward.1
$region0: #{conv_forward.1}
  #allocation0 [shape = 'u32[]', space=smem, size = 0x4, offset = 0x4, fixed_abs, tag = 'smem constant byte address 0x4 - core index']
  #allocation1 [shape = 'u32[144,128]{1,0:T(1,128)}', space=vmem, size = 0x12000, scoped, tag = 'internal scratch']
  %s0 = inlined_call_operand.vmem [shape: bf16[4,546], index: 0, kind: input, shape index: {}]
  %s1 = inlined_call_operand.vmem [shape: bf16[9,8,4], index: 1, kind: input, shape index: {}]
  %s2 = inlined_call_operand.vmem [shape: bf16[9,1,512], index: 2, kind: input, shape index: {}]
  %s3 = inlined_call_operand.vmem [shape: f32[8,1], index: 3, kind: input, shape index: {}]
  %s4 = inlined_call_operand.vmem [shape: f32[8,1], index: 4, kind: input, shape index: {}]
  %s5 = inlined_call_operand.vmem [shape: f32[8,512], index: 5, kind: output, shape index: {}]
  %s6 = sld [smem:[#allocation0]]
  $region30: #{conv_forward.1} parent=0
    _
  %s8 = ssub.s32 1, %s6
  %s9 = scalar_select 0, %s8, %s6
  // Predicated region
  $region2: #{conv_forward.1} parent=0 // pred_check
    _
  $region3: #{conv_forward.1} parent=0 // pred_check_branch
    %11 = sbr.rel (0) target = $region5
  $region4: #{conv_forward.1} parent=0 // pred_region
    _
  $region5: #{conv_forward.1} parent=0 // pred_fallthru
    _
  // Predicated region
  $region6: #{conv_forward.1} parent=0 // pred_check
    _
  $region7: #{conv_forward.1} parent=0 // pred_check_branch
    %13 = sbr.rel (0) target = $region9
  $region8: #{conv_forward.1} parent=0 // pred_region
    _
  $region9: #{conv_forward.1} parent=0 // pred_fallthru
    _
  // Predicated region
  $region10: #{conv_forward.1} parent=0 // pred_check
    _
  $region11: #{conv_forward.1} parent=0 // pred_check_branch
    %15 = sbr.rel (0) target = $region13
  $region12: #{conv_forward.1} parent=0 // pred_region
    _
  $region13: #{conv_forward.1} parent=0 // pred_fallthru
    _
  // Predicated region
  $region14: #{conv_forward.1} parent=0 // pred_check
    _
  $region15: #{conv_forward.1} parent=0 // pred_check_branch
    %17 = sbr.rel (0) target = $region17
  $region16: #{conv_forward.1} parent=0 // pred_region
    _
  $region17: #{conv_forward.1} parent=0 // pred_fallthru
    _
  // Predicated region
  $region18: #{conv_forward.1} parent=0 // pred_check
    _
  $region19: #{conv_forward.1} parent=0 // pred_check_branch
    %19 = sbr.rel (0) target = $region21
  $region20: #{conv_forward.1} parent=0 // pred_region
    _
  $region21: #{conv_forward.1} parent=0 // pred_fallthru
    _
  %v21 = vld [vmem:[%s0] sm:$0xff]
  %v22 = vld [vmem:[%s2] sm:$0xf]
  %v25 = vunpack.c.l.s4 1966171168
  %v26 = vunpack.c.0.s8 %v25
  %v27 = vlaneseq
  %v28 = vshrl.u32 %v27, 7
  %v29 = vsub.s32 %v26, %v28
  %v30 = vrot.slane %v22, %v29
  %v31 = vcombine.high %v30, %v30
  %v33 = vunpack.c.l.s4 1966171168
  %v34 = vunpack.c.0.s8 %v33
  %v35 = vlaneseq
  %v36 = vshrl.u32 %v35, 7
  %v37 = vsub.s32 %v34, %v36
  %v38 = vrot.slane %v30, %v37
  %v40 = vunpack.c.l.s4 1966171168
  %v41 = vunpack.c.0.s8 %v40
  %v42 = vlaneseq
  %v43 = vshrl.u32 %v42, 7
  %v44 = vsub.s32 %v41, %v43
  %v45 = vrot.slane %v31, %v44
  %v46 = vcombine.high %v38, %v38
  %v47 = vcombine.high %v45, %v45
  %v49 = vpack.i.b16 %v38, %v38
  %v51 = vlaneseq
  %v52 = vshrl.u32 %v51, 7
  %v53 = vsub.s32 0, %v52
  %v54 = vrot.slane %v49, %v53
  %v56 = vpack.i.b16 %v45, %v45
  %v58 = vlaneseq
  %v59 = vshrl.u32 %v58, 7
  %v60 = vsub.s32 0, %v59
  %v61 = vrot.slane %v56, %v60
  %v63 = vpack.i.b16 %v46, %v46
  %v65 = vlaneseq
  %v66 = vshrl.u32 %v65, 7
  %v67 = vsub.s32 0, %v66
  %v68 = vrot.slane %v63, %v67
  %v70 = vpack.i.b16 %v47, %v47
  %v72 = vlaneseq
  %v73 = vshrl.u32 %v72, 7
  %v74 = vsub.s32 0, %v73
  %v75 = vrot.slane %v70, %v74
  %v80 = vcombine.low %v54, %v61
  %v81 = vcombine.low %v68, %v75
  %v83 = vunpack.c.l.s4 1983009808
  %v84 = vunpack.c.0.s8 %v83
  %v85 = vlaneseq
  %v86 = vshrl.u32 %v85, 7
  %v87 = vsub.s32 %v84, %v86
  %v88 = vrot.slane %v80, %v87
  %v90 = vunpack.c.l.s4 1983009808
  %v91 = vunpack.c.0.s8 %v90
  %v92 = vlaneseq
  %v93 = vshrl.u32 %v92, 7
  %v94 = vsub.s32 %v91, %v93
  %v95 = vrot.slane %v81, %v94
  %v96 = vcombine.low %v88, %v95
  %v98 = vmul.bf16 %v21, %v96
  %v99 = vld [vmem:[%s1] sm:$0xf]
  %v100 = vld [vmem:[%s0 + $0x8] sm:$0x3]
  %s101 = scalar_lea.vmem %s2, 4
  %v102 = vld [vmem:[%s101] sm:$0xf]
  %v105 = vunpack.c.l.s4 1966171168
  %v106 = vunpack.c.0.s8 %v105
  %v107 = vlaneseq
  %v108 = vshrl.u32 %v107, 7
  %v109 = vsub.s32 %v106, %v108
  %v110 = vrot.slane %v102, %v109
  %v111 = vcombine.high %v110, %v110
  %v113 = vunpack.c.l.s4 1966171168
  %v114 = vunpack.c.0.s8 %v113
  %v115 = vlaneseq
  %v116 = vshrl.u32 %v115, 7
  %v117 = vsub.s32 %v114, %v116
  %v118 = vrot.slane %v110, %v117
  %v120 = vunpack.c.l.s4 1966171168
  %v121 = vunpack.c.0.s8 %v120
  %v122 = vlaneseq
  %v123 = vshrl.u32 %v122, 7
  %v124 = vsub.s32 %v121, %v123
  %v125 = vrot.slane %v111, %v124
  %v126 = vcombine.high %v118, %v118
  %v127 = vcombine.high %v125, %v125
  %v129 = vpack.i.b16 %v118, %v118
  %v131 = vlaneseq
  %v132 = vshrl.u32 %v131, 7
  %v133 = vsub.s32 0, %v132
  %v134 = vrot.slane %v129, %v133
  %v136 = vpack.i.b16 %v125, %v125
  %v138 = vlaneseq
  %v139 = vshrl.u32 %v138, 7
  %v140 = vsub.s32 0, %v139
  %v141 = vrot.slane %v136, %v140
  %v143 = vpack.i.b16 %v126, %v126
  %v145 = vlaneseq
  %v146 = vshrl.u32 %v145, 7
  %v147 = vsub.s32 0, %v146
  %v148 = vrot.slane %v143, %v147
  %v150 = vpack.i.b16 %v127, %v127
  %v152 = vlaneseq
  %v153 = vshrl.u32 %v152, 7
  %v154 = vsub.s32 0, %v153
  %v155 = vrot.slane %v150, %v154
  %v160 = vcombine.low %v134, %v141
  %v161 = vcombine.low %v148, %v155
  %v163 = vunpack.c.l.s4 1983009808
  %v164 = vunpack.c.0.s8 %v163
  %v165 = vlaneseq
  %v166 = vshrl.u32 %v165, 7
  %v167 = vsub.s32 %v164, %v166
  %v168 = vrot.slane %v160, %v167
  %v170 = vunpack.c.l.s4 1983009808
  %v171 = vunpack.c.0.s8 %v170
  %v172 = vlaneseq
  %v173 = vshrl.u32 %v172, 7
  %v174 = vsub.s32 %v171, %v173
  %v175 = vrot.slane %v161, %v174
  %v176 = vcombine.low %v168, %v175
  %177 = vrot.lane.b32.xlu0 %v176, 1
  %v178 = vpop.permute.xlu0 %177
  %v179 = vrot.slane %v178, 6
  %vm180 = vcmask 7168
  %v181 = vsel %vm180, %v179, %v178
  %v184 = vmul.bf16 %v21, %v181
  %v185 = vmul.bf16 %v100, %v179
  %s186 = scalar_lea.vmem %s1, 4
  %v187 = vld [vmem:[%s186] sm:$0xf]
  %v190 = vcombine.high %v184, %v184
  %v192 = vunpack.c.l.s4 1983009808
  %v193 = vunpack.c.0.s8 %v192
  %v194 = vlaneseq
  %v195 = vshrl.u32 %v194, 7
  %v196 = vsub.s32 %v193, %v195
  %v197 = vrot.slane %v184, %v196
  %v199 = vunpack.c.l.s4 1983009808
  %v200 = vunpack.c.0.s8 %v199
  %v201 = vlaneseq
  %v202 = vshrl.u32 %v201, 7
  %v203 = vsub.s32 %v200, %v202
  %v204 = vrot.slane %v190, %v203
  %v205 = vcombine.high %v197, %v197
  %v206 = vcombine.high %v204, %v204
  %v208 = vunpack.c.l.s4 1983009808
  %v209 = vunpack.c.0.s8 %v208
  %v210 = vlaneseq
  %v211 = vshrl.u32 %v210, 7
  %v212 = vsub.s32 %v209, %v211
  %v213 = vrot.slane %v185, %v212
  %214 = vrot.lane.b32.xlu0 %v197, 127
  %v215 = vpop.permute.xlu0 %214
  %216 = vrot.lane.b32.xlu0 %v205, 127
  %v217 = vpop.permute.xlu0 %216
  %218 = vrot.lane.b32.xlu0 %v204, 127
  %v219 = vpop.permute.xlu0 %218
  %220 = vrot.lane.b32.xlu0 %v206, 127
  %v221 = vpop.permute.xlu0 %220
  %222 = vrot.lane.b32.xlu0 %v213, 127
  %v223 = vpop.permute.xlu0 %222
  %vm224 = vcmask 1039360
  %v225 = vsel %vm224, %v215, %v217
  %v226 = vsel %vm224, %v217, %v219
  %v227 = vsel %vm224, %v219, %v221
  %v228 = vsel %vm224, %v221, %v223
  %vm229 = vcmask 31744
  %v231 = vsel %vm229, %v187, 0
  %vm233 = vcmask 1041408
  %v235 = vsel %vm233, %v225, 0
  %v238 = vsel %vm233, %v226, 0
  %v241 = vsel %vm233, %v227, 0
  %v244 = vsel %vm233, %v228, 0
  %246 = vmatprep.subr.bf16.mxu0 0
  %247 = vmatpush1.bf16.msra.mxu0 0
  %248 = vmatprep.subr.bf16.mxu0 0
  %249 = vmatpush1.bf16.msra.mxu0 0
  %250 = vmatprep.subr.bf16.mxu0 0
  %251 = vmatpush1.bf16.msra.mxu0 0
  %252 = vmatprep.subr.bf16.mxu0 0
  %253 = vmatpush1.bf16.msra.mxu0 0
  %254 = vmatprep.subr.bf16.mxu0 0
  %255 = vmatpush1.bf16.msra.mxu0 0
  %256 = vmatprep.subr.bf16.mxu0 0
  %257 = vmatpush1.bf16.msra.mxu0 0
  %258 = vmatprep.subr.bf16.mxu0 0
  %259 = vmatpush1.bf16.msra.mxu0 0
  %260 = vmatprep.subr.bf16.mxu0 %v238
  %261 = vmatpush1.bf16.msra.mxu0 %v235
  %262 = vmatprep.subr.bf16.mxu0 0
  %263 = vmatpush2.bf16.msra.mxu0 0
  %264 = vmatprep.subr.bf16.mxu0 0
  %265 = vmatpush2.bf16.msra.mxu0 0
  %266 = vmatprep.subr.bf16.mxu0 0
  %267 = vmatpush2.bf16.msra.mxu0 0
  %268 = vmatprep.subr.bf16.mxu0 0
  %269 = vmatpush2.bf16.msra.mxu0 0
  %270 = vmatprep.subr.bf16.mxu0 0
  %271 = vmatpush2.bf16.msra.mxu0 0
  %272 = vmatprep.subr.bf16.mxu0 0
  %273 = vmatpush2.bf16.msra.mxu0 0
  %274 = vmatprep.subr.bf16.mxu0 0
  %275 = vmatpush2.bf16.msra.mxu0 0
  %276 = vmatprep.subr.bf16.mxu0 0
  %277 = vmatpush2.bf16.msra.mxu0 0
  %278 = vmatprep.mubr.bf16.mxu0 0
  %279 = vmatmul.mubr.bf16.gmra.mxu0 %v231
  %v280 = vpop.f32.mrf.mxu0
  %v281 = vadd.f32 0.0, %v280
  %v282 = vpop.f32.mrf.mxu0
  %v283 = vadd.f32 0.0, %v282
  %v284 = vpop.f32.mrf.mxu0
  %v285 = vpop.f32.mrf.mxu0
  %286 = vdwg.mxu0
  %287 = vmatprep.subr.bf16.mxu0 0
  %288 = vmatpush1.bf16.msra.mxu0 0
  %289 = vmatprep.subr.bf16.mxu0 0
  %290 = vmatpush1.bf16.msra.mxu0 0
  %291 = vmatprep.subr.bf16.mxu0 0
  %292 = vmatpush1.bf16.msra.mxu0 0
  %293 = vmatprep.subr.bf16.mxu0 0
  %294 = vmatpush1.bf16.msra.mxu0 0
  %295 = vmatprep.subr.bf16.mxu0 0
  %296 = vmatpush1.bf16.msra.mxu0 0
  %297 = vmatprep.subr.bf16.mxu0 0
  %298 = vmatpush1.bf16.msra.mxu0 0
  %299 = vmatprep.subr.bf16.mxu0 0
  %300 = vmatpush1.bf16.msra.mxu0 0
  %301 = vmatprep.subr.bf16.mxu0 %v244
  %302 = vmatpush1.bf16.msra.mxu0 %v241
  %303 = vmatprep.subr.bf16.mxu0 0
  %304 = vmatpush2.bf16.msra.mxu0 0
  %305 = vmatprep.subr.bf16.mxu0 0
  %306 = vmatpush2.bf16.msra.mxu0 0
  %307 = vmatprep.subr.bf16.mxu0 0
  %308 = vmatpush2.bf16.msra.mxu0 0
  %309 = vmatprep.subr.bf16.mxu0 0
  %310 = vmatpush2.bf16.msra.mxu0 0
  %311 = vmatprep.subr.bf16.mxu0 0
  %312 = vmatpush2.bf16.msra.mxu0 0
  %313 = vmatprep.subr.bf16.mxu0 0
  %314 = vmatpush2.bf16.msra.mxu0 0
  %315 = vmatprep.subr.bf16.mxu0 0
  %316 = vmatpush2.bf16.msra.mxu0 0
  %317 = vmatprep.subr.bf16.mxu0 0
  %318 = vmatpush2.bf16.msra.mxu0 0
  %319 = vmatprep.mubr.bf16.mxu0 0
  %320 = vmatmul.mubr.bf16.gmra.mxu0 %v231
  %v321 = vpop.f32.mrf.mxu0
  %v322 = vadd.f32 0.0, %v321
  %v323 = vpop.f32.mrf.mxu0
  %v324 = vadd.f32 0.0, %v323
  %v325 = vpop.f32.mrf.mxu0
  %v326 = vpop.f32.mrf.mxu0
  %327 = vdwg.mxu0
  %v329 = vcombine.high %v98, %v98
  %v331 = vunpack.c.l.s4 1983009808
  %v332 = vunpack.c.0.s8 %v331
  %v333 = vlaneseq
  %v334 = vshrl.u32 %v333, 7
  %v335 = vsub.s32 %v332, %v334
  %v336 = vrot.slane %v98, %v335
  %v338 = vunpack.c.l.s4 1983009808
  %v339 = vunpack.c.0.s8 %v338
  %v340 = vlaneseq
  %v341 = vshrl.u32 %v340, 7
  %v342 = vsub.s32 %v339, %v341
  %v343 = vrot.slane %v329, %v342
  %v344 = vcombine.high %v336, %v336
  %v345 = vcombine.high %v343, %v343
  %v347 = vsel %vm229, %v99, 0
  %v350 = vsel %vm233, %v336, 0
  %v353 = vsel %vm233, %v344, 0
  %v356 = vsel %vm233, %v343, 0
  %v359 = vsel %vm233, %v345, 0
  %361 = vmatprep.subr.bf16.mxu0 0
  %362 = vmatpush1.bf16.msra.mxu0 0
  %363 = vmatprep.subr.bf16.mxu0 0
  %364 = vmatpush1.bf16.msra.mxu0 0
  %365 = vmatprep.subr.bf16.mxu0 0
  %366 = vmatpush1.bf16.msra.mxu0 0
  %367 = vmatprep.subr.bf16.mxu0 0
  %368 = vmatpush1.bf16.msra.mxu0 0
  %369 = vmatprep.subr.bf16.mxu0 0
  %370 = vmatpush1.bf16.msra.mxu0 0
  %371 = vmatprep.subr.bf16.mxu0 0
  %372 = vmatpush1.bf16.msra.mxu0 0
  %373 = vmatprep.subr.bf16.mxu0 0
  %374 = vmatpush1.bf16.msra.mxu0 0
  %375 = vmatprep.subr.bf16.mxu0 %v353
  %376 = vmatpush1.bf16.msra.mxu0 %v350
  %377 = vmatprep.subr.bf16.mxu0 0
  %378 = vmatpush2.bf16.msra.mxu0 0
  %379 = vmatprep.subr.bf16.mxu0 0
  %380 = vmatpush2.bf16.msra.mxu0 0
  %381 = vmatprep.subr.bf16.mxu0 0
  %382 = vmatpush2.bf16.msra.mxu0 0
  %383 = vmatprep.subr.bf16.mxu0 0
  %384 = vmatpush2.bf16.msra.mxu0 0
  %385 = vmatprep.subr.bf16.mxu0 0
  %386 = vmatpush2.bf16.msra.mxu0 0
  %387 = vmatprep.subr.bf16.mxu0 0
  %388 = vmatpush2.bf16.msra.mxu0 0
  %389 = vmatprep.subr.bf16.mxu0 0
  %390 = vmatpush2.bf16.msra.mxu0 0
  %391 = vmatprep.subr.bf16.mxu0 0
  %392 = vmatpush2.bf16.msra.mxu0 0
  %393 = vmatprep.mubr.bf16.mxu0 0
  %394 = vmatmul.mubr.bf16.gmra.mxu0 %v347
  %v395 = vpop.f32.mrf.mxu0
  %v396 = vadd.f32 %v281, %v395
  %v397 = vpop.f32.mrf.mxu0
  %v398 = vadd.f32 %v283, %v397
  %v399 = vpop.f32.mrf.mxu0
  %v400 = vpop.f32.mrf.mxu0
  %401 = vdwg.mxu0
  %402 = vmatprep.subr.bf16.mxu0 0
  %403 = vmatpush1.bf16.msra.mxu0 0
  %404 = vmatprep.subr.bf16.mxu0 0
  %405 = vmatpush1.bf16.msra.mxu0 0
  %406 = vmatprep.subr.bf16.mxu0 0
  %407 = vmatpush1.bf16.msra.mxu0 0
  %408 = vmatprep.subr.bf16.mxu0 0
  %409 = vmatpush1.bf16.msra.mxu0 0
  %410 = vmatprep.subr.bf16.mxu0 0
  %411 = vmatpush1.bf16.msra.mxu0 0
  %412 = vmatprep.subr.bf16.mxu0 0
  %413 = vmatpush1.bf16.msra.mxu0 0
  %414 = vmatprep.subr.bf16.mxu0 0
  %415 = vmatpush1.bf16.msra.mxu0 0
  %416 = vmatprep.subr.bf16.mxu0 %v359
  %417 = vmatpush1.bf16.msra.mxu0 %v356
  %418 = vmatprep.subr.bf16.mxu0 0
  %419 = vmatpush2.bf16.msra.mxu0 0
  %420 = vmatprep.subr.bf16.mxu0 0
  %421 = vmatpush2.bf16.msra.mxu0 0
  %422 = vmatprep.subr.bf16.mxu0 0
  %423 = vmatpush2.bf16.msra.mxu0 0
  %424 = vmatprep.subr.bf16.mxu0 0
  %425 = vmatpush2.bf16.msra.mxu0 0
  %426 = vmatprep.subr.bf16.mxu0 0
  %427 = vmatpush2.bf16.msra.mxu0 0
  %428 = vmatprep.subr.bf16.mxu0 0
  %429 = vmatpush2.bf16.msra.mxu0 0
  %430 = vmatprep.subr.bf16.mxu0 0
  %431 = vmatpush2.bf16.msra.mxu0 0
  %432 = vmatprep.subr.bf16.mxu0 0
  %433 = vmatpush2.bf16.msra.mxu0 0
  %434 = vmatprep.mubr.bf16.mxu0 0
  %435 = vmatmul.mubr.bf16.gmra.mxu0 %v347
  %v436 = vpop.f32.mrf.mxu0
  %v437 = vadd.f32 %v322, %v436
  %v438 = vpop.f32.mrf.mxu0
  %v439 = vadd.f32 %v324, %v438
  %v440 = vpop.f32.mrf.mxu0
  %v441 = vpop.f32.mrf.mxu0
  %442 = vdwg.mxu0
  %v443 = vld [vmem:[%s0] sm:$0xff]
  %v444 = vld [vmem:[%s0 + $0x8] sm:$0x3]
  %s445 = scalar_lea.vmem %s2, 8
  %v446 = vld [vmem:[%s445] sm:$0xf]
  %v449 = vunpack.c.l.s4 1966171168
  %v450 = vunpack.c.0.s8 %v449
  %v451 = vlaneseq
  %v452 = vshrl.u32 %v451, 7
  %v453 = vsub.s32 %v450, %v452
  %v454 = vrot.slane %v446, %v453
  %v455 = vcombine.high %v454, %v454
  %v457 = vunpack.c.l.s4 1966171168
  %v458 = vunpack.c.0.s8 %v457
  %v459 = vlaneseq
  %v460 = vshrl.u32 %v459, 7
  %v461 = vsub.s32 %v458, %v460
  %v462 = vrot.slane %v454, %v461
  %v464 = vunpack.c.l.s4 1966171168
  %v465 = vunpack.c.0.s8 %v464
  %v466 = vlaneseq
  %v467 = vshrl.u32 %v466, 7
  %v468 = vsub.s32 %v465, %v467
  %v469 = vrot.slane %v455, %v468
  %v470 = vcombine.high %v462, %v462
  %v471 = vcombine.high %v469, %v469
  %v473 = vpack.i.b16 %v462, %v462
  %v475 = vlaneseq
  %v476 = vshrl.u32 %v475, 7
  %v477 = vsub.s32 0, %v476
  %v478 = vrot.slane %v473, %v477
  %v480 = vpack.i.b16 %v469, %v469
  %v482 = vlaneseq
  %v483 = vshrl.u32 %v482, 7
  %v484 = vsub.s32 0, %v483
  %v485 = vrot.slane %v480, %v484
  %v487 = vpack.i.b16 %v470, %v470
  %v489 = vlaneseq
  %v490 = vshrl.u32 %v489, 7
  %v491 = vsub.s32 0, %v490
  %v492 = vrot.slane %v487, %v491
  %v494 = vpack.i.b16 %v471, %v471
  %v496 = vlaneseq
  %v497 = vshrl.u32 %v496, 7
  %v498 = vsub.s32 0, %v497
  %v499 = vrot.slane %v494, %v498
  %v504 = vcombine.low %v478, %v485
  %v505 = vcombine.low %v492, %v499
  %v507 = vunpack.c.l.s4 1983009808
  %v508 = vunpack.c.0.s8 %v507
  %v509 = vlaneseq
  %v510 = vshrl.u32 %v509, 7
  %v511 = vsub.s32 %v508, %v510
  %v512 = vrot.slane %v504, %v511
  %v514 = vunpack.c.l.s4 1983009808
  %v515 = vunpack.c.0.s8 %v514
  %v516 = vlaneseq
  %v517 = vshrl.u32 %v516, 7
  %v518 = vsub.s32 %v515, %v517
  %v519 = vrot.slane %v505, %v518
  %v520 = vcombine.low %v512, %v519
  %521 = vrot.lane.b32.xlu0 %v520, 2
  %v522 = vpop.permute.xlu0 %521
  %v523 = vrot.slane %v522, 6
  %vm524 = vcmask 15360
  %v525 = vsel %vm524, %v523, %v522
  %v528 = vmul.bf16 %v443, %v525
  %v529 = vmul.bf16 %v444, %v523
  %s530 = scalar_lea.vmem %s1, 8
  %v531 = vld [vmem:[%s530] sm:$0xf]
  %v534 = vcombine.high %v528, %v528
  %v536 = vunpack.c.l.s4 1983009808
  %v537 = vunpack.c.0.s8 %v536
  %v538 = vlaneseq
  %v539 = vshrl.u32 %v538, 7
  %v540 = vsub.s32 %v537, %v539
  %v541 = vrot.slane %v528, %v540
  %v543 = vunpack.c.l.s4 1983009808
  %v544 = vunpack.c.0.s8 %v543
  %v545 = vlaneseq
  %v546 = vshrl.u32 %v545, 7
  %v547 = vsub.s32 %v544, %v546
  %v548 = vrot.slane %v534, %v547
  %v549 = vcombine.high %v541, %v541
  %v550 = vcombine.high %v548, %v548
  %v552 = vunpack.c.l.s4 1983009808
  %v553 = vunpack.c.0.s8 %v552
  %v554 = vlaneseq
  %v555 = vshrl.u32 %v554, 7
  %v556 = vsub.s32 %v553, %v555
  %v557 = vrot.slane %v529, %v556
  %558 = vrot.lane.b32.xlu0 %v541, 126
  %v559 = vpop.permute.xlu0 %558
  %560 = vrot.lane.b32.xlu0 %v549, 126
  %v561 = vpop.permute.xlu0 %560
  %562 = vrot.lane.b32.xlu0 %v548, 126
  %v563 = vpop.permute.xlu0 %562
  %564 = vrot.lane.b32.xlu0 %v550, 126
  %v565 = vpop.permute.xlu0 %564
  %566 = vrot.lane.b32.xlu0 %v557, 126
  %v567 = vpop.permute.xlu0 %566
  %vm568 = vcmask 1031168
  %v569 = vsel %vm568, %v559, %v561
  %v570 = vsel %vm568, %v561, %v563
  %v571 = vsel %vm568, %v563, %v565
  %v572 = vsel %vm568, %v565, %v567
  %v574 = vsel %vm229, %v531, 0
  %v577 = vsel %vm233, %v569, 0
  %v580 = vsel %vm233, %v570, 0
  %v583 = vsel %vm233, %v571, 0
  %v586 = vsel %vm233, %v572, 0
  %588 = vmatprep.subr.bf16.mxu0 0
  %589 = vmatpush1.bf16.msra.mxu0 0
  %590 = vmatprep.subr.bf16.mxu0 0
  %591 = vmatpush1.bf16.msra.mxu0 0
  %592 = vmatprep.subr.bf16.mxu0 0
  %593 = vmatpush1.bf16.msra.mxu0 0
  %594 = vmatprep.subr.bf16.mxu0 0
  %595 = vmatpush1.bf16.msra.mxu0 0
  %596 = vmatprep.subr.bf16.mxu0 0
  %597 = vmatpush1.bf16.msra.mxu0 0
  %598 = vmatprep.subr.bf16.mxu0 0
  %599 = vmatpush1.bf16.msra.mxu0 0
  %600 = vmatprep.subr.bf16.mxu0 0
  %601 = vmatpush1.bf16.msra.mxu0 0
  %602 = vmatprep.subr.bf16.mxu0 %v580
  %603 = vmatpush1.bf16.msra.mxu0 %v577
  %604 = vmatprep.subr.bf16.mxu0 0
  %605 = vmatpush2.bf16.msra.mxu0 0
  %606 = vmatprep.subr.bf16.mxu0 0
  %607 = vmatpush2.bf16.msra.mxu0 0
  %608 = vmatprep.subr.bf16.mxu0 0
  %609 = vmatpush2.bf16.msra.mxu0 0
  %610 = vmatprep.subr.bf16.mxu0 0
  %611 = vmatpush2.bf16.msra.mxu0 0
  %612 = vmatprep.subr.bf16.mxu0 0
  %613 = vmatpush2.bf16.msra.mxu0 0
  %614 = vmatprep.subr.bf16.mxu0 0
  %615 = vmatpush2.bf16.msra.mxu0 0
  %616 = vmatprep.subr.bf16.mxu0 0
  %617 = vmatpush2.bf16.msra.mxu0 0
  %618 = vmatprep.subr.bf16.mxu0 0
  %619 = vmatpush2.bf16.msra.mxu0 0
  %620 = vmatprep.mubr.bf16.mxu0 0
  %621 = vmatmul.mubr.bf16.gmra.mxu0 %v574
  %v622 = vpop.f32.mrf.mxu0
  %v623 = vadd.f32 0.0, %v622
  %v624 = vpop.f32.mrf.mxu0
  %v625 = vadd.f32 0.0, %v624
  %v626 = vpop.f32.mrf.mxu0
  %v627 = vpop.f32.mrf.mxu0
  %628 = vdwg.mxu0
  %629 = vmatprep.subr.bf16.mxu0 0
  %630 = vmatpush1.bf16.msra.mxu0 0
  %631 = vmatprep.subr.bf16.mxu0 0
  %632 = vmatpush1.bf16.msra.mxu0 0
  %633 = vmatprep.subr.bf16.mxu0 0
  %634 = vmatpush1.bf16.msra.mxu0 0
  %635 = vmatprep.subr.bf16.mxu0 0
  %636 = vmatpush1.bf16.msra.mxu0 0
  %637 = vmatprep.subr.bf16.mxu0 0
  %638 = vmatpush1.bf16.msra.mxu0 0
  %639 = vmatprep.subr.bf16.mxu0 0
  %640 = vmatpush1.bf16.msra.mxu0 0
  %641 = vmatprep.subr.bf16.mxu0 0
  %642 = vmatpush1.bf16.msra.mxu0 0
  %643 = vmatprep.subr.bf16.mxu0 %v586
  %644 = vmatpush1.bf16.msra.mxu0 %v583
  %645 = vmatprep.subr.bf16.mxu0 0
  %646 = vmatpush2.bf16.msra.mxu0 0
  %647 = vmatprep.subr.bf16.mxu0 0
  %648 = vmatpush2.bf16.msra.mxu0 0
  %649 = vmatprep.subr.bf16.mxu0 0
  %650 = vmatpush2.bf16.msra.mxu0 0
  %651 = vmatprep.subr.bf16.mxu0 0
  %652 = vmatpush2.bf16.msra.mxu0 0
  %653 = vmatprep.subr.bf16.mxu0 0
  %654 = vmatpush2.bf16.msra.mxu0 0
  %655 = vmatprep.subr.bf16.mxu0 0
  %656 = vmatpush2.bf16.msra.mxu0 0
  %657 = vmatprep.subr.bf16.mxu0 0
  %658 = vmatpush2.bf16.msra.mxu0 0
  %659 = vmatprep.subr.bf16.mxu0 0
  %660 = vmatpush2.bf16.msra.mxu0 0
  %661 = vmatprep.mubr.bf16.mxu0 0
  %662 = vmatmul.mubr.bf16.gmra.mxu0 %v574
  %v663 = vpop.f32.mrf.mxu0
  %v664 = vadd.f32 0.0, %v663
  %v665 = vpop.f32.mrf.mxu0
  %v666 = vadd.f32 0.0, %v665
  %v667 = vpop.f32.mrf.mxu0
  %v668 = vpop.f32.mrf.mxu0
  %669 = vdwg.mxu0
  %v670 = vadd.f32 %v396, %v623
  %v671 = vadd.f32 %v398, %v625
  %v672 = vadd.f32 %v437, %v664
  %v673 = vadd.f32 %v439, %v666
  %v674 = vld [vmem:[%s0] sm:$0xff]
  %v675 = vld [vmem:[%s0 + $0x8] sm:$0x3]
  %s676 = scalar_lea.vmem %s2, 12
  %v677 = vld [vmem:[%s676] sm:$0xf]
  %v680 = vunpack.c.l.s4 1966171168
  %v681 = vunpack.c.0.s8 %v680
  %v682 = vlaneseq
  %v683 = vshrl.u32 %v682, 7
  %v684 = vsub.s32 %v681, %v683
  %v685 = vrot.slane %v677, %v684
  %v686 = vcombine.high %v685, %v685
  %v688 = vunpack.c.l.s4 1966171168
  %v689 = vunpack.c.0.s8 %v688
  %v690 = vlaneseq
  %v691 = vshrl.u32 %v690, 7
  %v692 = vsub.s32 %v689, %v691
  %v693 = vrot.slane %v685, %v692
  %v695 = vunpack.c.l.s4 1966171168
  %v696 = vunpack.c.0.s8 %v695
  %v697 = vlaneseq
  %v698 = vshrl.u32 %v697, 7
  %v699 = vsub.s32 %v696, %v698
  %v700 = vrot.slane %v686, %v699
  %v701 = vcombine.high %v693, %v693
  %v702 = vcombine.high %v700, %v700
  %v704 = vpack.i.b16 %v693, %v693
  %v706 = vlaneseq
  %v707 = vshrl.u32 %v706, 7
  %v708 = vsub.s32 0, %v707
  %v709 = vrot.slane %v704, %v708
  %v711 = vpack.i.b16 %v700, %v700
  %v713 = vlaneseq
  %v714 = vshrl.u32 %v713, 7
  %v715 = vsub.s32 0, %v714
  %v716 = vrot.slane %v711, %v715
  %v718 = vpack.i.b16 %v701, %v701
  %v720 = vlaneseq
  %v721 = vshrl.u32 %v720, 7
  %v722 = vsub.s32 0, %v721
  %v723 = vrot.slane %v718, %v722
  %v725 = vpack.i.b16 %v702, %v702
  %v727 = vlaneseq
  %v728 = vshrl.u32 %v727, 7
  %v729 = vsub.s32 0, %v728
  %v730 = vrot.slane %v725, %v729
  %v735 = vcombine.low %v709, %v716
  %v736 = vcombine.low %v723, %v730
  %v738 = vunpack.c.l.s4 1983009808
  %v739 = vunpack.c.0.s8 %v738
  %v740 = vlaneseq
  %v741 = vshrl.u32 %v740, 7
  %v742 = vsub.s32 %v739, %v741
  %v743 = vrot.slane %v735, %v742
  %v745 = vunpack.c.l.s4 1983009808
  %v746 = vunpack.c.0.s8 %v745
  %v747 = vlaneseq
  %v748 = vshrl.u32 %v747, 7
  %v749 = vsub.s32 %v746, %v748
  %v750 = vrot.slane %v736, %v749
  %v751 = vcombine.low %v743, %v750
  %752 = vrot.lane.b32.xlu0 %v751, 16
  %v753 = vpop.permute.xlu0 %752
  %v754 = vrot.slane %v753, 6
  %vm755 = vcmask 130048
  %v756 = vsel %vm755, %v754, %v753
  %v759 = vmul.bf16 %v674, %v756
  %v760 = vmul.bf16 %v675, %v754
  %s761 = scalar_lea.vmem %s1, 12
  %v762 = vld [vmem:[%s761] sm:$0xf]
  %v765 = vcombine.high %v759, %v759
  %v767 = vunpack.c.l.s4 1983009808
  %v768 = vunpack.c.0.s8 %v767
  %v769 = vlaneseq
  %v770 = vshrl.u32 %v769, 7
  %v771 = vsub.s32 %v768, %v770
  %v772 = vrot.slane %v759, %v771
  %v774 = vunpack.c.l.s4 1983009808
  %v775 = vunpack.c.0.s8 %v774
  %v776 = vlaneseq
  %v777 = vshrl.u32 %v776, 7
  %v778 = vsub.s32 %v775, %v777
  %v779 = vrot.slane %v765, %v778
  %v780 = vcombine.high %v772, %v772
  %v781 = vcombine.high %v779, %v779
  %v783 = vunpack.c.l.s4 1983009808
  %v784 = vunpack.c.0.s8 %v783
  %v785 = vlaneseq
  %v786 = vshrl.u32 %v785, 7
  %v787 = vsub.s32 %v784, %v786
  %v788 = vrot.slane %v760, %v787
  %789 = vrot.lane.b32.xlu0 %v772, 112
  %v790 = vpop.permute.xlu0 %789
  %791 = vrot.lane.b32.xlu0 %v780, 112
  %v792 = vpop.permute.xlu0 %791
  %793 = vrot.lane.b32.xlu0 %v779, 112
  %v794 = vpop.permute.xlu0 %793
  %795 = vrot.lane.b32.xlu0 %v781, 112
  %v796 = vpop.permute.xlu0 %795
  %797 = vrot.lane.b32.xlu0 %v788, 112
  %v798 = vpop.permute.xlu0 %797
  %vm799 = vcmask 916480
  %v800 = vsel %vm799, %v790, %v792
  %v801 = vsel %vm799, %v792, %v794
  %v802 = vsel %vm799, %v794, %v796
  %v803 = vsel %vm799, %v796, %v798
  %v805 = vsel %vm229, %v762, 0
  %v808 = vsel %vm233, %v800, 0
  %v811 = vsel %vm233, %v801, 0
  %v814 = vsel %vm233, %v802, 0
  %v817 = vsel %vm233, %v803, 0
  %819 = vmatprep.subr.bf16.mxu0 0
  %820 = vmatpush1.bf16.msra.mxu0 0
  %821 = vmatprep.subr.bf16.mxu0 0
  %822 = vmatpush1.bf16.msra.mxu0 0
  %823 = vmatprep.subr.bf16.mxu0 0
  %824 = vmatpush1.bf16.msra.mxu0 0
  %825 = vmatprep.subr.bf16.mxu0 0
  %826 = vmatpush1.bf16.msra.mxu0 0
  %827 = vmatprep.subr.bf16.mxu0 0
  %828 = vmatpush1.bf16.msra.mxu0 0
  %829 = vmatprep.subr.bf16.mxu0 0
  %830 = vmatpush1.bf16.msra.mxu0 0
  %831 = vmatprep.subr.bf16.mxu0 0
  %832 = vmatpush1.bf16.msra.mxu0 0
  %833 = vmatprep.subr.bf16.mxu0 %v811
  %834 = vmatpush1.bf16.msra.mxu0 %v808
  %835 = vmatprep.subr.bf16.mxu0 0
  %836 = vmatpush2.bf16.msra.mxu0 0
  %837 = vmatprep.subr.bf16.mxu0 0
  %838 = vmatpush2.bf16.msra.mxu0 0
  %839 = vmatprep.subr.bf16.mxu0 0
  %840 = vmatpush2.bf16.msra.mxu0 0
  %841 = vmatprep.subr.bf16.mxu0 0
  %842 = vmatpush2.bf16.msra.mxu0 0
  %843 = vmatprep.subr.bf16.mxu0 0
  %844 = vmatpush2.bf16.msra.mxu0 0
  %845 = vmatprep.subr.bf16.mxu0 0
  %846 = vmatpush2.bf16.msra.mxu0 0
  %847 = vmatprep.subr.bf16.mxu0 0
  %848 = vmatpush2.bf16.msra.mxu0 0
  %849 = vmatprep.subr.bf16.mxu0 0
  %850 = vmatpush2.bf16.msra.mxu0 0
  %851 = vmatprep.mubr.bf16.mxu0 0
  %852 = vmatmul.mubr.bf16.gmra.mxu0 %v805
  %v853 = vpop.f32.mrf.mxu0
  %v854 = vadd.f32 0.0, %v853
  %v855 = vpop.f32.mrf.mxu0
  %v856 = vadd.f32 0.0, %v855
  %v857 = vpop.f32.mrf.mxu0
  %v858 = vpop.f32.mrf.mxu0
  %859 = vdwg.mxu0
  %860 = vmatprep.subr.bf16.mxu0 0
  %861 = vmatpush1.bf16.msra.mxu0 0
  %862 = vmatprep.subr.bf16.mxu0 0
  %863 = vmatpush1.bf16.msra.mxu0 0
  %864 = vmatprep.subr.bf16.mxu0 0
  %865 = vmatpush1.bf16.msra.mxu0 0
  %866 = vmatprep.subr.bf16.mxu0 0
  %867 = vmatpush1.bf16.msra.mxu0 0
  %868 = vmatprep.subr.bf16.mxu0 0
  %869 = vmatpush1.bf16.msra.mxu0 0
  %870 = vmatprep.subr.bf16.mxu0 0
  %871 = vmatpush1.bf16.msra.mxu0 0
  %872 = vmatprep.subr.bf16.mxu0 0
  %873 = vmatpush1.bf16.msra.mxu0 0
  %874 = vmatprep.subr.bf16.mxu0 %v817
  %875 = vmatpush1.bf16.msra.mxu0 %v814
  %876 = vmatprep.subr.bf16.mxu0 0
  %877 = vmatpush2.bf16.msra.mxu0 0
  %878 = vmatprep.subr.bf16.mxu0 0
  %879 = vmatpush2.bf16.msra.mxu0 0
  %880 = vmatprep.subr.bf16.mxu0 0
  %881 = vmatpush2.bf16.msra.mxu0 0
  %882 = vmatprep.subr.bf16.mxu0 0
  %883 = vmatpush2.bf16.msra.mxu0 0
  %884 = vmatprep.subr.bf16.mxu0 0
  %885 = vmatpush2.bf16.msra.mxu0 0
  %886 = vmatprep.subr.bf16.mxu0 0
  %887 = vmatpush2.bf16.msra.mxu0 0
  %888 = vmatprep.subr.bf16.mxu0 0
  %889 = vmatpush2.bf16.msra.mxu0 0
  %890 = vmatprep.subr.bf16.mxu0 0
  %891 = vmatpush2.bf16.msra.mxu0 0
  %892 = vmatprep.mubr.bf16.mxu0 0
  %893 = vmatmul.mubr.bf16.gmra.mxu0 %v805
  %v894 = vpop.f32.mrf.mxu0
  %v895 = vadd.f32 0.0, %v894
  %v896 = vpop.f32.mrf.mxu0
  %v897 = vadd.f32 0.0, %v896
  %v898 = vpop.f32.mrf.mxu0
  %v899 = vpop.f32.mrf.mxu0
  %900 = vdwg.mxu0
  %v901 = vadd.f32 %v670, %v854
  %v902 = vadd.f32 %v671, %v856
  %v903 = vadd.f32 %v672, %v895
  %v904 = vadd.f32 %v673, %v897
  %v905 = vld [vmem:[%s0] sm:$0xff]
  %v906 = vld [vmem:[%s0 + $0x8] sm:$0x3]
  %s907 = scalar_lea.vmem %s1, 16
  %v908 = vld [vmem:[%s907] sm:$0xf]
  %v911 = vcombine.high %v905, %v905
  %v913 = vunpack.c.l.s4 1983009808
  %v914 = vunpack.c.0.s8 %v913
  %v915 = vlaneseq
  %v916 = vshrl.u32 %v915, 7
  %v917 = vsub.s32 %v914, %v916
  %v918 = vrot.slane %v905, %v917
  %v920 = vunpack.c.l.s4 1983009808
  %v921 = vunpack.c.0.s8 %v920
  %v922 = vlaneseq
  %v923 = vshrl.u32 %v922, 7
  %v924 = vsub.s32 %v921, %v923
  %v925 = vrot.slane %v911, %v924
  %v926 = vcombine.high %v918, %v918
  %v927 = vcombine.high %v925, %v925
  %v929 = vunpack.c.l.s4 1983009808
  %v930 = vunpack.c.0.s8 %v929
  %v931 = vlaneseq
  %v932 = vshrl.u32 %v931, 7
  %v933 = vsub.s32 %v930, %v932
  %v934 = vrot.slane %v906, %v933
  %935 = vrot.lane.b32.xlu0 %v918, 111
  %v936 = vpop.permute.xlu0 %935
  %937 = vrot.lane.b32.xlu0 %v926, 111
  %v938 = vpop.permute.xlu0 %937
  %939 = vrot.lane.b32.xlu0 %v925, 111
  %v940 = vpop.permute.xlu0 %939
  %941 = vrot.lane.b32.xlu0 %v927, 111
  %v942 = vpop.permute.xlu0 %941
  %943 = vrot.lane.b32.xlu0 %v934, 111
  %v944 = vpop.permute.xlu0 %943
  %vm945 = vcmask 908288
  %v946 = vsel %vm945, %v936, %v938
  %v947 = vsel %vm945, %v938, %v940
  %v948 = vsel %vm945, %v940, %v942
  %v949 = vsel %vm945, %v942, %v944
  %v951 = vsel %vm229, %v908, 0
  %v954 = vsel %vm233, %v946, 0
  %v957 = vsel %vm233, %v947, 0
  %v960 = vsel %vm233, %v948, 0
  %v963 = vsel %vm233, %v949, 0
  %965 = vmatprep.subr.bf16.mxu0 0
  %966 = vmatpush1.bf16.msra.mxu0 0
  %967 = vmatprep.subr.bf16.mxu0 0
  %968 = vmatpush1.bf16.msra.mxu0 0
  %969 = vmatprep.subr.bf16.mxu0 0
  %970 = vmatpush1.bf16.msra.mxu0 0
  %971 = vmatprep.subr.bf16.mxu0 0
  %972 = vmatpush1.bf16.msra.mxu0 0
  %973 = vmatprep.subr.bf16.mxu0 0
  %974 = vmatpush1.bf16.msra.mxu0 0
  %975 = vmatprep.subr.bf16.mxu0 0
  %976 = vmatpush1.bf16.msra.mxu0 0
  %977 = vmatprep.subr.bf16.mxu0 0
  %978 = vmatpush1.bf16.msra.mxu0 0
  %979 = vmatprep.subr.bf16.mxu0 %v957
  %980 = vmatpush1.bf16.msra.mxu0 %v954
  %981 = vmatprep.subr.bf16.mxu0 0
  %982 = vmatpush2.bf16.msra.mxu0 0
  %983 = vmatprep.subr.bf16.mxu0 0
  %984 = vmatpush2.bf16.msra.mxu0 0
  %985 = vmatprep.subr.bf16.mxu0 0
  %986 = vmatpush2.bf16.msra.mxu0 0
  %987 = vmatprep.subr.bf16.mxu0 0
  %988 = vmatpush2.bf16.msra.mxu0 0
  %989 = vmatprep.subr.bf16.mxu0 0
  %990 = vmatpush2.bf16.msra.mxu0 0
  %991 = vmatprep.subr.bf16.mxu0 0
  %992 = vmatpush2.bf16.msra.mxu0 0
  %993 = vmatprep.subr.bf16.mxu0 0
  %994 = vmatpush2.bf16.msra.mxu0 0
  %995 = vmatprep.subr.bf16.mxu0 0
  %996 = vmatpush2.bf16.msra.mxu0 0
  %997 = vmatprep.mubr.bf16.mxu0 0
  %998 = vmatmul.mubr.bf16.gmra.mxu0 %v951
  %v999 = vpop.f32.mrf.mxu0
  %v1000 = vadd.f32 0.0, %v999
  %v1001 = vpop.f32.mrf.mxu0
  %v1002 = vadd.f32 0.0, %v1001
  %v1003 = vpop.f32.mrf.mxu0
  %v1004 = vpop.f32.mrf.mxu0
  %1005 = vdwg.mxu0
  %1006 = vmatprep.subr.bf16.mxu0 0
  %1007 = vmatpush1.bf16.msra.mxu0 0
  %1008 = vmatprep.subr.bf16.mxu0 0
  %1009 = vmatpush1.bf16.msra.mxu0 0
  %1010 = vmatprep.subr.bf16.mxu0 0
  %1011 = vmatpush1.bf16.msra.mxu0 0
  %1012 = vmatprep.subr.bf16.mxu0 0
  %1013 = vmatpush1.bf16.msra.mxu0 0
  %1014 = vmatprep.subr.bf16.mxu0 0
  %1015 = vmatpush1.bf16.msra.mxu0 0
  %1016 = vmatprep.subr.bf16.mxu0 0
  %1017 = vmatpush1.bf16.msra.mxu0 0
  %1018 = vmatprep.subr.bf16.mxu0 0
  %1019 = vmatpush1.bf16.msra.mxu0 0
  %1020 = vmatprep.subr.bf16.mxu0 %v963
  %1021 = vmatpush1.bf16.msra.mxu0 %v960
  %1022 = vmatprep.subr.bf16.mxu0 0
  %1023 = vmatpush2.bf16.msra.mxu0 0
  %1024 = vmatprep.subr.bf16.mxu0 0
  %1025 = vmatpush2.bf16.msra.mxu0 0
  %1026 = vmatprep.subr.bf16.mxu0 0
  %1027 = vmatpush2.bf16.msra.mxu0 0
  %1028 = vmatprep.subr.bf16.mxu0 0
  %1029 = vmatpush2.bf16.msra.mxu0 0
  %1030 = vmatprep.subr.bf16.mxu0 0
  %1031 = vmatpush2.bf16.msra.mxu0 0
  %1032 = vmatprep.subr.bf16.mxu0 0
  %1033 = vmatpush2.bf16.msra.mxu0 0
  %1034 = vmatprep.subr.bf16.mxu0 0
  %1035 = vmatpush2.bf16.msra.mxu0 0
  %1036 = vmatprep.subr.bf16.mxu0 0
  %1037 = vmatpush2.bf16.msra.mxu0 0
  %1038 = vmatprep.mubr.bf16.mxu0 0
  %1039 = vmatmul.mubr.bf16.gmra.mxu0 %v951
  %v1040 = vpop.f32.mrf.mxu0
  %v1041 = vadd.f32 0.0, %v1040
  %v1042 = vpop.f32.mrf.mxu0
  %v1043 = vadd.f32 0.0, %v1042
  %v1044 = vpop.f32.mrf.mxu0
  %v1045 = vpop.f32.mrf.mxu0
  %1046 = vdwg.mxu0
  %v1047 = vadd.f32 %v901, %v1000
  %v1048 = vadd.f32 %v902, %v1002
  %v1049 = vadd.f32 %v903, %v1041
  %v1050 = vadd.f32 %v904, %v1043
  %v1051 = vld [vmem:[%s0] sm:$0xff]
  %v1052 = vld [vmem:[%s0 + $0x8] sm:$0x3]
  %s1053 = scalar_lea.vmem %s2, 20
  %v1054 = vld [vmem:[%s1053] sm:$0xf]
  %v1057 = vunpack.c.l.s4 1966171168
  %v1058 = vunpack.c.0.s8 %v1057
  %v1059 = vlaneseq
  %v1060 = vshrl.u32 %v1059, 7
  %v1061 = vsub.s32 %v1058, %v1060
  %v1062 = vrot.slane %v1054, %v1061
  %v1063 = vcombine.high %v1062, %v1062
  %v1065 = vunpack.c.l.s4 1966171168
  %v1066 = vunpack.c.0.s8 %v1065
  %v1067 = vlaneseq
  %v1068 = vshrl.u32 %v1067, 7
  %v1069 = vsub.s32 %v1066, %v1068
  %v1070 = vrot.slane %v1062, %v1069
  %v1072 = vunpack.c.l.s4 1966171168
  %v1073 = vunpack.c.0.s8 %v1072
  %v1074 = vlaneseq
  %v1075 = vshrl.u32 %v1074, 7
  %v1076 = vsub.s32 %v1073, %v1075
  %v1077 = vrot.slane %v1063, %v1076
  %v1078 = vcombine.high %v1070, %v1070
  %v1079 = vcombine.high %v1077, %v1077
  %v1081 = vpack.i.b16 %v1070, %v1070
  %v1083 = vlaneseq
  %v1084 = vshrl.u32 %v1083, 7
  %v1085 = vsub.s32 0, %v1084
  %v1086 = vrot.slane %v1081, %v1085
  %v1088 = vpack.i.b16 %v1077, %v1077
  %v1090 = vlaneseq
  %v1091 = vshrl.u32 %v1090, 7
  %v1092 = vsub.s32 0, %v1091
  %v1093 = vrot.slane %v1088, %v1092
  %v1095 = vpack.i.b16 %v1078, %v1078
  %v1097 = vlaneseq
  %v1098 = vshrl.u32 %v1097, 7
  %v1099 = vsub.s32 0, %v1098
  %v1100 = vrot.slane %v1095, %v1099
  %v1102 = vpack.i.b16 %v1079, %v1079
  %v1104 = vlaneseq
  %v1105 = vshrl.u32 %v1104, 7
  %v1106 = vsub.s32 0, %v1105
  %v1107 = vrot.slane %v1102, %v1106
  %v1112 = vcombine.low %v1086, %v1093
  %v1113 = vcombine.low %v1100, %v1107
  %v1115 = vunpack.c.l.s4 1983009808
  %v1116 = vunpack.c.0.s8 %v1115
  %v1117 = vlaneseq
  %v1118 = vshrl.u32 %v1117, 7
  %v1119 = vsub.s32 %v1116, %v1118
  %v1120 = vrot.slane %v1112, %v1119
  %v1122 = vunpack.c.l.s4 1983009808
  %v1123 = vunpack.c.0.s8 %v1122
  %v1124 = vlaneseq
  %v1125 = vshrl.u32 %v1124, 7
  %v1126 = vsub.s32 %v1123, %v1125
  %v1127 = vrot.slane %v1113, %v1126
  %v1128 = vcombine.low %v1120, %v1127
  %1129 = vrot.lane.b32.xlu0 %v1128, 18
  %v1130 = vpop.permute.xlu0 %1129
  %v1131 = vrot.slane %v1130, 6
  %vm1132 = vcmask 146432
  %v1133 = vsel %vm1132, %v1131, %v1130
  %v1136 = vmul.bf16 %v1051, %v1133
  %v1137 = vmul.bf16 %v1052, %v1131
  %s1138 = scalar_lea.vmem %s1, 20
  %v1139 = vld [vmem:[%s1138] sm:$0xf]
  %v1142 = vcombine.high %v1136, %v1136
  %v1144 = vunpack.c.l.s4 1983009808
  %v1145 = vunpack.c.0.s8 %v1144
  %v1146 = vlaneseq
  %v1147 = vshrl.u32 %v1146, 7
  %v1148 = vsub.s32 %v1145, %v1147
  %v1149 = vrot.slane %v1136, %v1148
  %v1151 = vunpack.c.l.s4 1983009808
  %v1152 = vunpack.c.0.s8 %v1151
  %v1153 = vlaneseq
  %v1154 = vshrl.u32 %v1153, 7
  %v1155 = vsub.s32 %v1152, %v1154
  %v1156 = vrot.slane %v1142, %v1155
  %v1157 = vcombine.high %v1149, %v1149
  %v1158 = vcombine.high %v1156, %v1156
  %v1160 = vunpack.c.l.s4 1983009808
  %v1161 = vunpack.c.0.s8 %v1160
  %v1162 = vlaneseq
  %v1163 = vshrl.u32 %v1162, 7
  %v1164 = vsub.s32 %v1161, %v1163
  %v1165 = vrot.slane %v1137, %v1164
  %1166 = vrot.lane.b32.xlu0 %v1149, 110
  %v1167 = vpop.permute.xlu0 %1166
  %1168 = vrot.lane.b32.xlu0 %v1157, 110
  %v1169 = vpop.permute.xlu0 %1168
  %1170 = vrot.lane.b32.xlu0 %v1156, 110
  %v1171 = vpop.permute.xlu0 %1170
  %1172 = vrot.lane.b32.xlu0 %v1158, 110
  %v1173 = vpop.permute.xlu0 %1172
  %1174 = vrot.lane.b32.xlu0 %v1165, 110
  %v1175 = vpop.permute.xlu0 %1174
  %vm1176 = vcmask 900096
  %v1177 = vsel %vm1176, %v1167, %v1169
  %v1178 = vsel %vm1176, %v1169, %v1171
  %v1179 = vsel %vm1176, %v1171, %v1173
  %v1180 = vsel %vm1176, %v1173, %v1175
  %v1182 = vsel %vm229, %v1139, 0
  %v1185 = vsel %vm233, %v1177, 0
  %v1188 = vsel %vm233, %v1178, 0
  %v1191 = vsel %vm233, %v1179, 0
  %v1194 = vsel %vm233, %v1180, 0
  %1196 = vmatprep.subr.bf16.mxu0 0
  %1197 = vmatpush1.bf16.msra.mxu0 0
  %1198 = vmatprep.subr.bf16.mxu0 0
  %1199 = vmatpush1.bf16.msra.mxu0 0
  %1200 = vmatprep.subr.bf16.mxu0 0
  %1201 = vmatpush1.bf16.msra.mxu0 0
  %1202 = vmatprep.subr.bf16.mxu0 0
  %1203 = vmatpush1.bf16.msra.mxu0 0
  %1204 = vmatprep.subr.bf16.mxu0 0
  %1205 = vmatpush1.bf16.msra.mxu0 0
  %1206 = vmatprep.subr.bf16.mxu0 0
  %1207 = vmatpush1.bf16.msra.mxu0 0
  %1208 = vmatprep.subr.bf16.mxu0 0
  %1209 = vmatpush1.bf16.msra.mxu0 0
  %1210 = vmatprep.subr.bf16.mxu0 %v1188
  %1211 = vmatpush1.bf16.msra.mxu0 %v1185
  %1212 = vmatprep.subr.bf16.mxu0 0
  %1213 = vmatpush2.bf16.msra.mxu0 0
  %1214 = vmatprep.subr.bf16.mxu0 0
  %1215 = vmatpush2.bf16.msra.mxu0 0
  %1216 = vmatprep.subr.bf16.mxu0 0
  %1217 = vmatpush2.bf16.msra.mxu0 0
  %1218 = vmatprep.subr.bf16.mxu0 0
  %1219 = vmatpush2.bf16.msra.mxu0 0
  %1220 = vmatprep.subr.bf16.mxu0 0
  %1221 = vmatpush2.bf16.msra.mxu0 0
  %1222 = vmatprep.subr.bf16.mxu0 0
  %1223 = vmatpush2.bf16.msra.mxu0 0
  %1224 = vmatprep.subr.bf16.mxu0 0
  %1225 = vmatpush2.bf16.msra.mxu0 0
  %1226 = vmatprep.subr.bf16.mxu0 0
  %1227 = vmatpush2.bf16.msra.mxu0 0
  %1228 = vmatprep.mubr.bf16.mxu0 0
  %1229 = vmatmul.mubr.bf16.gmra.mxu0 %v1182
  %v1230 = vpop.f32.mrf.mxu0
  %v1231 = vadd.f32 0.0, %v1230
  %v1232 = vpop.f32.mrf.mxu0
  %v1233 = vadd.f32 0.0, %v1232
  %v1234 = vpop.f32.mrf.mxu0
  %v1235 = vpop.f32.mrf.mxu0
  %1236 = vdwg.mxu0
  %1237 = vmatprep.subr.bf16.mxu0 0
  %1238 = vmatpush1.bf16.msra.mxu0 0
  %1239 = vmatprep.subr.bf16.mxu0 0
  %1240 = vmatpush1.bf16.msra.mxu0 0
  %1241 = vmatprep.subr.bf16.mxu0 0
  %1242 = vmatpush1.bf16.msra.mxu0 0
  %1243 = vmatprep.subr.bf16.mxu0 0
  %1244 = vmatpush1.bf16.msra.mxu0 0
  %1245 = vmatprep.subr.bf16.mxu0 0
  %1246 = vmatpush1.bf16.msra.mxu0 0
  %1247 = vmatprep.subr.bf16.mxu0 0
  %1248 = vmatpush1.bf16.msra.mxu0 0
  %1249 = vmatprep.subr.bf16.mxu0 0
  %1250 = vmatpush1.bf16.msra.mxu0 0
  %1251 = vmatprep.subr.bf16.mxu0 %v1194
  %1252 = vmatpush1.bf16.msra.mxu0 %v1191
  %1253 = vmatprep.subr.bf16.mxu0 0
  %1254 = vmatpush2.bf16.msra.mxu0 0
  %1255 = vmatprep.subr.bf16.mxu0 0
  %1256 = vmatpush2.bf16.msra.mxu0 0
  %1257 = vmatprep.subr.bf16.mxu0 0
  %1258 = vmatpush2.bf16.msra.mxu0 0
  %1259 = vmatprep.subr.bf16.mxu0 0
  %1260 = vmatpush2.bf16.msra.mxu0 0
  %1261 = vmatprep.subr.bf16.mxu0 0
  %1262 = vmatpush2.bf16.msra.mxu0 0
  %1263 = vmatprep.subr.bf16.mxu0 0
  %1264 = vmatpush2.bf16.msra.mxu0 0
  %1265 = vmatprep.subr.bf16.mxu0 0
  %1266 = vmatpush2.bf16.msra.mxu0 0
  %1267 = vmatprep.subr.bf16.mxu0 0
  %1268 = vmatpush2.bf16.msra.mxu0 0
  %1269 = vmatprep.mubr.bf16.mxu0 0
  %1270 = vmatmul.mubr.bf16.gmra.mxu0 %v1182
  %v1271 = vpop.f32.mrf.mxu0
  %v1272 = vadd.f32 0.0, %v1271
  %v1273 = vpop.f32.mrf.mxu0
  %v1274 = vadd.f32 0.0, %v1273
  %v1275 = vpop.f32.mrf.mxu0
  %v1276 = vpop.f32.mrf.mxu0
  %1277 = vdwg.mxu0
  %v1278 = vadd.f32 %v1047, %v1231
  %v1279 = vadd.f32 %v1048, %v1233
  %v1280 = vadd.f32 %v1049, %v1272
  %v1281 = vadd.f32 %v1050, %v1274
  %v1282 = vld [vmem:[%s0] sm:$0xff]
  %v1283 = vld [vmem:[%s0 + $0x8] sm:$0x3]
  %s1284 = scalar_lea.vmem %s2, 24
  %v1285 = vld [vmem:[%s1284] sm:$0xf]
  %v1288 = vunpack.c.l.s4 1966171168
  %v1289 = vunpack.c.0.s8 %v1288
  %v1290 = vlaneseq
  %v1291 = vshrl.u32 %v1290, 7
  %v1292 = vsub.s32 %v1289, %v1291
  %v1293 = vrot.slane %v1285, %v1292
  %v1294 = vcombine.high %v1293, %v1293
  %v1296 = vunpack.c.l.s4 1966171168
  %v1297 = vunpack.c.0.s8 %v1296
  %v1298 = vlaneseq
  %v1299 = vshrl.u32 %v1298, 7
  %v1300 = vsub.s32 %v1297, %v1299
  %v1301 = vrot.slane %v1293, %v1300
  %v1303 = vunpack.c.l.s4 1966171168
  %v1304 = vunpack.c.0.s8 %v1303
  %v1305 = vlaneseq
  %v1306 = vshrl.u32 %v1305, 7
  %v1307 = vsub.s32 %v1304, %v1306
  %v1308 = vrot.slane %v1294, %v1307
  %v1309 = vcombine.high %v1301, %v1301
  %v1310 = vcombine.high %v1308, %v1308
  %v1312 = vpack.i.b16 %v1301, %v1301
  %v1314 = vlaneseq
  %v1315 = vshrl.u32 %v1314, 7
  %v1316 = vsub.s32 0, %v1315
  %v1317 = vrot.slane %v1312, %v1316
  %v1319 = vpack.i.b16 %v1308, %v1308
  %v1321 = vlaneseq
  %v1322 = vshrl.u32 %v1321, 7
  %v1323 = vsub.s32 0, %v1322
  %v1324 = vrot.slane %v1319, %v1323
  %v1326 = vpack.i.b16 %v1309, %v1309
  %v1328 = vlaneseq
  %v1329 = vshrl.u32 %v1328, 7
  %v1330 = vsub.s32 0, %v1329
  %v1331 = vrot.slane %v1326, %v1330
  %v1333 = vpack.i.b16 %v1310, %v1310
  %v1335 = vlaneseq
  %v1336 = vshrl.u32 %v1335, 7
  %v1337 = vsub.s32 0, %v1336
  %v1338 = vrot.slane %v1333, %v1337
  %v1343 = vcombine.low %v1317, %v1324
  %v1344 = vcombine.low %v1331, %v1338
  %v1346 = vunpack.c.l.s4 1983009808
  %v1347 = vunpack.c.0.s8 %v1346
  %v1348 = vlaneseq
  %v1349 = vshrl.u32 %v1348, 7
  %v1350 = vsub.s32 %v1347, %v1349
  %v1351 = vrot.slane %v1343, %v1350
  %v1353 = vunpack.c.l.s4 1983009808
  %v1354 = vunpack.c.0.s8 %v1353
  %v1355 = vlaneseq
  %v1356 = vshrl.u32 %v1355, 7
  %v1357 = vsub.s32 %v1354, %v1356
  %v1358 = vrot.slane %v1344, %v1357
  %v1359 = vcombine.low %v1351, %v1358
  %1360 = vrot.lane.b32.xlu0 %v1359, 32
  %v1361 = vpop.permute.xlu0 %1360
  %v1362 = vrot.slane %v1361, 6
  %vm1363 = vcmask 261120
  %v1364 = vsel %vm1363, %v1362, %v1361
  %v1367 = vmul.bf16 %v1282, %v1364
  %v1368 = vmul.bf16 %v1283, %v1362
  %s1369 = scalar_lea.vmem %s1, 24
  %v1370 = vld [vmem:[%s1369] sm:$0xf]
  %v1373 = vcombine.high %v1367, %v1367
  %v1375 = vunpack.c.l.s4 1983009808
  %v1376 = vunpack.c.0.s8 %v1375
  %v1377 = vlaneseq
  %v1378 = vshrl.u32 %v1377, 7
  %v1379 = vsub.s32 %v1376, %v1378
  %v1380 = vrot.slane %v1367, %v1379
  %v1382 = vunpack.c.l.s4 1983009808
  %v1383 = vunpack.c.0.s8 %v1382
  %v1384 = vlaneseq
  %v1385 = vshrl.u32 %v1384, 7
  %v1386 = vsub.s32 %v1383, %v1385
  %v1387 = vrot.slane %v1373, %v1386
  %v1388 = vcombine.high %v1380, %v1380
  %v1389 = vcombine.high %v1387, %v1387
  %v1391 = vunpack.c.l.s4 1983009808
  %v1392 = vunpack.c.0.s8 %v1391
  %v1393 = vlaneseq
  %v1394 = vshrl.u32 %v1393, 7
  %v1395 = vsub.s32 %v1392, %v1394
  %v1396 = vrot.slane %v1368, %v1395
  %1397 = vrot.lane.b32.xlu0 %v1380, 96
  %v1398 = vpop.permute.xlu0 %1397
  %1399 = vrot.lane.b32.xlu0 %v1388, 96
  %v1400 = vpop.permute.xlu0 %1399
  %1401 = vrot.lane.b32.xlu0 %v1387, 96
  %v1402 = vpop.permute.xlu0 %1401
  %1403 = vrot.lane.b32.xlu0 %v1389, 96
  %v1404 = vpop.permute.xlu0 %1403
  %1405 = vrot.lane.b32.xlu0 %v1396, 96
  %v1406 = vpop.permute.xlu0 %1405
  %vm1407 = vcmask 785408
  %v1408 = vsel %vm1407, %v1398, %v1400
  %v1409 = vsel %vm1407, %v1400, %v1402
  %v1410 = vsel %vm1407, %v1402, %v1404
  %v1411 = vsel %vm1407, %v1404, %v1406
  %v1413 = vsel %vm229, %v1370, 0
  %v1416 = vsel %vm233, %v1408, 0
  %v1419 = vsel %vm233, %v1409, 0
  %v1422 = vsel %vm233, %v1410, 0
  %v1425 = vsel %vm233, %v1411, 0
  %1427 = vmatprep.subr.bf16.mxu0 0
  %1428 = vmatpush1.bf16.msra.mxu0 0
  %1429 = vmatprep.subr.bf16.mxu0 0
  %1430 = vmatpush1.bf16.msra.mxu0 0
  %1431 = vmatprep.subr.bf16.mxu0 0
  %1432 = vmatpush1.bf16.msra.mxu0 0
  %1433 = vmatprep.subr.bf16.mxu0 0
  %1434 = vmatpush1.bf16.msra.mxu0 0
  %1435 = vmatprep.subr.bf16.mxu0 0
  %1436 = vmatpush1.bf16.msra.mxu0 0
  %1437 = vmatprep.subr.bf16.mxu0 0
  %1438 = vmatpush1.bf16.msra.mxu0 0
  %1439 = vmatprep.subr.bf16.mxu0 0
  %1440 = vmatpush1.bf16.msra.mxu0 0
  %1441 = vmatprep.subr.bf16.mxu0 %v1419
  %1442 = vmatpush1.bf16.msra.mxu0 %v1416
  %1443 = vmatprep.subr.bf16.mxu0 0
  %1444 = vmatpush2.bf16.msra.mxu0 0
  %1445 = vmatprep.subr.bf16.mxu0 0
  %1446 = vmatpush2.bf16.msra.mxu0 0
  %1447 = vmatprep.subr.bf16.mxu0 0
  %1448 = vmatpush2.bf16.msra.mxu0 0
  %1449 = vmatprep.subr.bf16.mxu0 0
  %1450 = vmatpush2.bf16.msra.mxu0 0
  %1451 = vmatprep.subr.bf16.mxu0 0
  %1452 = vmatpush2.bf16.msra.mxu0 0
  %1453 = vmatprep.subr.bf16.mxu0 0
  %1454 = vmatpush2.bf16.msra.mxu0 0
  %1455 = vmatprep.subr.bf16.mxu0 0
  %1456 = vmatpush2.bf16.msra.mxu0 0
  %1457 = vmatprep.subr.bf16.mxu0 0
  %1458 = vmatpush2.bf16.msra.mxu0 0
  %1459 = vmatprep.mubr.bf16.mxu0 0
  %1460 = vmatmul.mubr.bf16.gmra.mxu0 %v1413
  %v1461 = vpop.f32.mrf.mxu0
  %v1462 = vadd.f32 0.0, %v1461
  %v1463 = vpop.f32.mrf.mxu0
  %v1464 = vadd.f32 0.0, %v1463
  %v1465 = vpop.f32.mrf.mxu0
  %v1466 = vpop.f32.mrf.mxu0
  %1467 = vdwg.mxu0
  %1468 = vmatprep.subr.bf16.mxu0 0
  %1469 = vmatpush1.bf16.msra.mxu0 0
  %1470 = vmatprep.subr.bf16.mxu0 0
  %1471 = vmatpush1.bf16.msra.mxu0 0
  %1472 = vmatprep.subr.bf16.mxu0 0
  %1473 = vmatpush1.bf16.msra.mxu0 0
  %1474 = vmatprep.subr.bf16.mxu0 0
  %1475 = vmatpush1.bf16.msra.mxu0 0
  %1476 = vmatprep.subr.bf16.mxu0 0
  %1477 = vmatpush1.bf16.msra.mxu0 0
  %1478 = vmatprep.subr.bf16.mxu0 0
  %1479 = vmatpush1.bf16.msra.mxu0 0
  %1480 = vmatprep.subr.bf16.mxu0 0
  %1481 = vmatpush1.bf16.msra.mxu0 0
  %1482 = vmatprep.subr.bf16.mxu0 %v1425
  %1483 = vmatpush1.bf16.msra.mxu0 %v1422
  %1484 = vmatprep.subr.bf16.mxu0 0
  %1485 = vmatpush2.bf16.msra.mxu0 0
  %1486 = vmatprep.subr.bf16.mxu0 0
  %1487 = vmatpush2.bf16.msra.mxu0 0
  %1488 = vmatprep.subr.bf16.mxu0 0
  %1489 = vmatpush2.bf16.msra.mxu0 0
  %1490 = vmatprep.subr.bf16.mxu0 0
  %1491 = vmatpush2.bf16.msra.mxu0 0
  %1492 = vmatprep.subr.bf16.mxu0 0
  %1493 = vmatpush2.bf16.msra.mxu0 0
  %1494 = vmatprep.subr.bf16.mxu0 0
  %1495 = vmatpush2.bf16.msra.mxu0 0
  %1496 = vmatprep.subr.bf16.mxu0 0
  %1497 = vmatpush2.bf16.msra.mxu0 0
  %1498 = vmatprep.subr.bf16.mxu0 0
  %1499 = vmatpush2.bf16.msra.mxu0 0
  %1500 = vmatprep.mubr.bf16.mxu0 0
  %1501 = vmatmul.mubr.bf16.gmra.mxu0 %v1413
  %v1502 = vpop.f32.mrf.mxu0
  %v1503 = vadd.f32 0.0, %v1502
  %v1504 = vpop.f32.mrf.mxu0
  %v1505 = vadd.f32 0.0, %v1504
  %v1506 = vpop.f32.mrf.mxu0
  %v1507 = vpop.f32.mrf.mxu0
  %1508 = vdwg.mxu0
  %v1509 = vadd.f32 %v1278, %v1462
  %v1510 = vadd.f32 %v1279, %v1464
  %v1511 = vadd.f32 %v1280, %v1503
  %v1512 = vadd.f32 %v1281, %v1505
  %v1513 = vld [vmem:[%s0] sm:$0xff]
  %v1514 = vld [vmem:[%s0 + $0x8] sm:$0x3]
  %s1515 = scalar_lea.vmem %s2, 28
  %v1516 = vld [vmem:[%s1515] sm:$0xf]
  %v1519 = vunpack.c.l.s4 1966171168
  %v1520 = vunpack.c.0.s8 %v1519
  %v1521 = vlaneseq
  %v1522 = vshrl.u32 %v1521, 7
  %v1523 = vsub.s32 %v1520, %v1522
  %v1524 = vrot.slane %v1516, %v1523
  %v1525 = vcombine.high %v1524, %v1524
  %v1527 = vunpack.c.l.s4 1966171168
  %v1528 = vunpack.c.0.s8 %v1527
  %v1529 = vlaneseq
  %v1530 = vshrl.u32 %v1529, 7
  %v1531 = vsub.s32 %v1528, %v1530
  %v1532 = vrot.slane %v1524, %v1531
  %v1534 = vunpack.c.l.s4 1966171168
  %v1535 = vunpack.c.0.s8 %v1534
  %v1536 = vlaneseq
  %v1537 = vshrl.u32 %v1536, 7
  %v1538 = vsub.s32 %v1535, %v1537
  %v1539 = vrot.slane %v1525, %v1538
  %v1540 = vcombine.high %v1532, %v1532
  %v1541 = vcombine.high %v1539, %v1539
  %v1543 = vpack.i.b16 %v1532, %v1532
  %v1545 = vlaneseq
  %v1546 = vshrl.u32 %v1545, 7
  %v1547 = vsub.s32 0, %v1546
  %v1548 = vrot.slane %v1543, %v1547
  %v1550 = vpack.i.b16 %v1539, %v1539
  %v1552 = vlaneseq
  %v1553 = vshrl.u32 %v1552, 7
  %v1554 = vsub.s32 0, %v1553
  %v1555 = vrot.slane %v1550, %v1554
  %v1557 = vpack.i.b16 %v1540, %v1540
  %v1559 = vlaneseq
  %v1560 = vshrl.u32 %v1559, 7
  %v1561 = vsub.s32 0, %v1560
  %v1562 = vrot.slane %v1557, %v1561
  %v1564 = vpack.i.b16 %v1541, %v1541
  %v1566 = vlaneseq
  %v1567 = vshrl.u32 %v1566, 7
  %v1568 = vsub.s32 0, %v1567
  %v1569 = vrot.slane %v1564, %v1568
  %v1574 = vcombine.low %v1548, %v1555
  %v1575 = vcombine.low %v1562, %v1569
  %v1577 = vunpack.c.l.s4 1983009808
  %v1578 = vunpack.c.0.s8 %v1577
  %v1579 = vlaneseq
  %v1580 = vshrl.u32 %v1579, 7
  %v1581 = vsub.s32 %v1578, %v1580
  %v1582 = vrot.slane %v1574, %v1581
  %v1584 = vunpack.c.l.s4 1983009808
  %v1585 = vunpack.c.0.s8 %v1584
  %v1586 = vlaneseq
  %v1587 = vshrl.u32 %v1586, 7
  %v1588 = vsub.s32 %v1585, %v1587
  %v1589 = vrot.slane %v1575, %v1588
  %v1590 = vcombine.low %v1582, %v1589
  %1591 = vrot.lane.b32.xlu0 %v1590, 33
  %v1592 = vpop.permute.xlu0 %1591
  %v1593 = vrot.slane %v1592, 6
  %vm1594 = vcmask 269312
  %v1595 = vsel %vm1594, %v1593, %v1592
  %v1598 = vmul.bf16 %v1513, %v1595
  %v1599 = vmul.bf16 %v1514, %v1593
  %s1600 = scalar_lea.vmem %s1, 28
  %v1601 = vld [vmem:[%s1600] sm:$0xf]
  %v1604 = vcombine.high %v1598, %v1598
  %v1606 = vunpack.c.l.s4 1983009808
  %v1607 = vunpack.c.0.s8 %v1606
  %v1608 = vlaneseq
  %v1609 = vshrl.u32 %v1608, 7
  %v1610 = vsub.s32 %v1607, %v1609
  %v1611 = vrot.slane %v1598, %v1610
  %v1613 = vunpack.c.l.s4 1983009808
  %v1614 = vunpack.c.0.s8 %v1613
  %v1615 = vlaneseq
  %v1616 = vshrl.u32 %v1615, 7
  %v1617 = vsub.s32 %v1614, %v1616
  %v1618 = vrot.slane %v1604, %v1617
  %v1619 = vcombine.high %v1611, %v1611
  %v1620 = vcombine.high %v1618, %v1618
  %v1622 = vunpack.c.l.s4 1983009808
  %v1623 = vunpack.c.0.s8 %v1622
  %v1624 = vlaneseq
  %v1625 = vshrl.u32 %v1624, 7
  %v1626 = vsub.s32 %v1623, %v1625
  %v1627 = vrot.slane %v1599, %v1626
  %1628 = vrot.lane.b32.xlu0 %v1611, 95
  %v1629 = vpop.permute.xlu0 %1628
  %1630 = vrot.lane.b32.xlu0 %v1619, 95
  %v1631 = vpop.permute.xlu0 %1630
  %1632 = vrot.lane.b32.xlu0 %v1618, 95
  %v1633 = vpop.permute.xlu0 %1632
  %1634 = vrot.lane.b32.xlu0 %v1620, 95
  %v1635 = vpop.permute.xlu0 %1634
  %1636 = vrot.lane.b32.xlu0 %v1627, 95
  %v1637 = vpop.permute.xlu0 %1636
  %vm1638 = vcmask 777216
  %v1639 = vsel %vm1638, %v1629, %v1631
  %v1640 = vsel %vm1638, %v1631, %v1633
  %v1641 = vsel %vm1638, %v1633, %v1635
  %v1642 = vsel %vm1638, %v1635, %v1637
  %v1644 = vsel %vm229, %v1601, 0
  %v1647 = vsel %vm233, %v1639, 0
  %v1650 = vsel %vm233, %v1640, 0
  %v1653 = vsel %vm233, %v1641, 0
  %v1656 = vsel %vm233, %v1642, 0
  %1658 = vmatprep.subr.bf16.mxu0 0
  %1659 = vmatpush1.bf16.msra.mxu0 0
  %1660 = vmatprep.subr.bf16.mxu0 0
  %1661 = vmatpush1.bf16.msra.mxu0 0
  %1662 = vmatprep.subr.bf16.mxu0 0
  %1663 = vmatpush1.bf16.msra.mxu0 0
  %1664 = vmatprep.subr.bf16.mxu0 0
  %1665 = vmatpush1.bf16.msra.mxu0 0
  %1666 = vmatprep.subr.bf16.mxu0 0
  %1667 = vmatpush1.bf16.msra.mxu0 0
  %1668 = vmatprep.subr.bf16.mxu0 0
  %1669 = vmatpush1.bf16.msra.mxu0 0
  %1670 = vmatprep.subr.bf16.mxu0 0
  %1671 = vmatpush1.bf16.msra.mxu0 0
  %1672 = vmatprep.subr.bf16.mxu0 %v1650
  %1673 = vmatpush1.bf16.msra.mxu0 %v1647
  %1674 = vmatprep.subr.bf16.mxu0 0
  %1675 = vmatpush2.bf16.msra.mxu0 0
  %1676 = vmatprep.subr.bf16.mxu0 0
  %1677 = vmatpush2.bf16.msra.mxu0 0
  %1678 = vmatprep.subr.bf16.mxu0 0
  %1679 = vmatpush2.bf16.msra.mxu0 0
  %1680 = vmatprep.subr.bf16.mxu0 0
  %1681 = vmatpush2.bf16.msra.mxu0 0
  %1682 = vmatprep.subr.bf16.mxu0 0
  %1683 = vmatpush2.bf16.msra.mxu0 0
  %1684 = vmatprep.subr.bf16.mxu0 0
  %1685 = vmatpush2.bf16.msra.mxu0 0
  %1686 = vmatprep.subr.bf16.mxu0 0
  %1687 = vmatpush2.bf16.msra.mxu0 0
  %1688 = vmatprep.subr.bf16.mxu0 0
  %1689 = vmatpush2.bf16.msra.mxu0 0
  %1690 = vmatprep.mubr.bf16.mxu0 0
  %1691 = vmatmul.mubr.bf16.gmra.mxu0 %v1644
  %v1692 = vpop.f32.mrf.mxu0
  %v1693 = vadd.f32 0.0, %v1692
  %v1694 = vpop.f32.mrf.mxu0
  %v1695 = vadd.f32 0.0, %v1694
  %v1696 = vpop.f32.mrf.mxu0
  %v1697 = vpop.f32.mrf.mxu0
  %1698 = vdwg.mxu0
  %1699 = vmatprep.subr.bf16.mxu0 0
  %1700 = vmatpush1.bf16.msra.mxu0 0
  %1701 = vmatprep.subr.bf16.mxu0 0
  %1702 = vmatpush1.bf16.msra.mxu0 0
  %1703 = vmatprep.subr.bf16.mxu0 0
  %1704 = vmatpush1.bf16.msra.mxu0 0
  %1705 = vmatprep.subr.bf16.mxu0 0
  %1706 = vmatpush1.bf16.msra.mxu0 0
  %1707 = vmatprep.subr.bf16.mxu0 0
  %1708 = vmatpush1.bf16.msra.mxu0 0
  %1709 = vmatprep.subr.bf16.mxu0 0
  %1710 = vmatpush1.bf16.msra.mxu0 0
  %1711 = vmatprep.subr.bf16.mxu0 0
  %1712 = vmatpush1.bf16.msra.mxu0 0
  %1713 = vmatprep.subr.bf16.mxu0 %v1656
  %1714 = vmatpush1.bf16.msra.mxu0 %v1653
  %1715 = vmatprep.subr.bf16.mxu0 0
  %1716 = vmatpush2.bf16.msra.mxu0 0
  %1717 = vmatprep.subr.bf16.mxu0 0
  %1718 = vmatpush2.bf16.msra.mxu0 0
  %1719 = vmatprep.subr.bf16.mxu0 0
  %1720 = vmatpush2.bf16.msra.mxu0 0
  %1721 = vmatprep.subr.bf16.mxu0 0
  %1722 = vmatpush2.bf16.msra.mxu0 0
  %1723 = vmatprep.subr.bf16.mxu0 0
  %1724 = vmatpush2.bf16.msra.mxu0 0
  %1725 = vmatprep.subr.bf16.mxu0 0
  %1726 = vmatpush2.bf16.msra.mxu0 0
  %1727 = vmatprep.subr.bf16.mxu0 0
  %1728 = vmatpush2.bf16.msra.mxu0 0
  %1729 = vmatprep.subr.bf16.mxu0 0
  %1730 = vmatpush2.bf16.msra.mxu0 0
  %1731 = vmatprep.mubr.bf16.mxu0 0
  %1732 = vmatmul.mubr.bf16.gmra.mxu0 %v1644
  %v1733 = vpop.f32.mrf.mxu0
  %v1734 = vadd.f32 0.0, %v1733
  %v1735 = vpop.f32.mrf.mxu0
  %v1736 = vadd.f32 0.0, %v1735
  %v1737 = vpop.f32.mrf.mxu0
  %v1738 = vpop.f32.mrf.mxu0
  %1739 = vdwg.mxu0
  %v1740 = vadd.f32 %v1509, %v1693
  %v1741 = vadd.f32 %v1510, %v1695
  %v1742 = vadd.f32 %v1511, %v1734
  %v1743 = vadd.f32 %v1512, %v1736
  %v1744 = vld [vmem:[%s0] sm:$0xff]
  %v1745 = vld [vmem:[%s0 + $0x8] sm:$0x3]
  %s1746 = scalar_lea.vmem %s2, 32
  %v1747 = vld [vmem:[%s1746] sm:$0xf]
  %v1750 = vunpack.c.l.s4 1966171168
  %v1751 = vunpack.c.0.s8 %v1750
  %v1752 = vlaneseq
  %v1753 = vshrl.u32 %v1752, 7
  %v1754 = vsub.s32 %v1751, %v1753
  %v1755 = vrot.slane %v1747, %v1754
  %v1756 = vcombine.high %v1755, %v1755
  %v1758 = vunpack.c.l.s4 1966171168
  %v1759 = vunpack.c.0.s8 %v1758
  %v1760 = vlaneseq
  %v1761 = vshrl.u32 %v1760, 7
  %v1762 = vsub.s32 %v1759, %v1761
  %v1763 = vrot.slane %v1755, %v1762
  %v1765 = vunpack.c.l.s4 1966171168
  %v1766 = vunpack.c.0.s8 %v1765
  %v1767 = vlaneseq
  %v1768 = vshrl.u32 %v1767, 7
  %v1769 = vsub.s32 %v1766, %v1768
  %v1770 = vrot.slane %v1756, %v1769
  %v1771 = vcombine.high %v1763, %v1763
  %v1772 = vcombine.high %v1770, %v1770
  %v1774 = vpack.i.b16 %v1763, %v1763
  %v1776 = vlaneseq
  %v1777 = vshrl.u32 %v1776, 7
  %v1778 = vsub.s32 0, %v1777
  %v1779 = vrot.slane %v1774, %v1778
  %v1781 = vpack.i.b16 %v1770, %v1770
  %v1783 = vlaneseq
  %v1784 = vshrl.u32 %v1783, 7
  %v1785 = vsub.s32 0, %v1784
  %v1786 = vrot.slane %v1781, %v1785
  %v1788 = vpack.i.b16 %v1771, %v1771
  %v1790 = vlaneseq
  %v1791 = vshrl.u32 %v1790, 7
  %v1792 = vsub.s32 0, %v1791
  %v1793 = vrot.slane %v1788, %v1792
  %v1795 = vpack.i.b16 %v1772, %v1772
  %v1797 = vlaneseq
  %v1798 = vshrl.u32 %v1797, 7
  %v1799 = vsub.s32 0, %v1798
  %v1800 = vrot.slane %v1795, %v1799
  %v1805 = vcombine.low %v1779, %v1786
  %v1806 = vcombine.low %v1793, %v1800
  %v1808 = vunpack.c.l.s4 1983009808
  %v1809 = vunpack.c.0.s8 %v1808
  %v1810 = vlaneseq
  %v1811 = vshrl.u32 %v1810, 7
  %v1812 = vsub.s32 %v1809, %v1811
  %v1813 = vrot.slane %v1805, %v1812
  %v1815 = vunpack.c.l.s4 1983009808
  %v1816 = vunpack.c.0.s8 %v1815
  %v1817 = vlaneseq
  %v1818 = vshrl.u32 %v1817, 7
  %v1819 = vsub.s32 %v1816, %v1818
  %v1820 = vrot.slane %v1806, %v1819
  %v1821 = vcombine.low %v1813, %v1820
  %1822 = vrot.lane.b32.xlu0 %v1821, 34
  %v1823 = vpop.permute.xlu0 %1822
  %v1824 = vrot.slane %v1823, 6
  %vm1825 = vcmask 277504
  %v1826 = vsel %vm1825, %v1824, %v1823
  %v1829 = vmul.bf16 %v1744, %v1826
  %v1830 = vmul.bf16 %v1745, %v1824
  %s1831 = scalar_lea.vmem %s1, 32
  %v1832 = vld [vmem:[%s1831] sm:$0xf]
  %v1835 = vcombine.high %v1829, %v1829
  %v1837 = vunpack.c.l.s4 1983009808
  %v1838 = vunpack.c.0.s8 %v1837
  %v1839 = vlaneseq
  %v1840 = vshrl.u32 %v1839, 7
  %v1841 = vsub.s32 %v1838, %v1840
  %v1842 = vrot.slane %v1829, %v1841
  %v1844 = vunpack.c.l.s4 1983009808
  %v1845 = vunpack.c.0.s8 %v1844
  %v1846 = vlaneseq
  %v1847 = vshrl.u32 %v1846, 7
  %v1848 = vsub.s32 %v1845, %v1847
  %v1849 = vrot.slane %v1835, %v1848
  %v1850 = vcombine.high %v1842, %v1842
  %v1851 = vcombine.high %v1849, %v1849
  %v1853 = vunpack.c.l.s4 1983009808
  %v1854 = vunpack.c.0.s8 %v1853
  %v1855 = vlaneseq
  %v1856 = vshrl.u32 %v1855, 7
  %v1857 = vsub.s32 %v1854, %v1856
  %v1858 = vrot.slane %v1830, %v1857
  %1859 = vrot.lane.b32.xlu0 %v1842, 94
  %v1860 = vpop.permute.xlu0 %1859
  %1861 = vrot.lane.b32.xlu0 %v1850, 94
  %v1862 = vpop.permute.xlu0 %1861
  %1863 = vrot.lane.b32.xlu0 %v1849, 94
  %v1864 = vpop.permute.xlu0 %1863
  %1865 = vrot.lane.b32.xlu0 %v1851, 94
  %v1866 = vpop.permute.xlu0 %1865
  %1867 = vrot.lane.b32.xlu0 %v1858, 94
  %v1868 = vpop.permute.xlu0 %1867
  %vm1869 = vcmask 769024
  %v1870 = vsel %vm1869, %v1860, %v1862
  %v1871 = vsel %vm1869, %v1862, %v1864
  %v1872 = vsel %vm1869, %v1864, %v1866
  %v1873 = vsel %vm1869, %v1866, %v1868
  %v1875 = vsel %vm229, %v1832, 0
  %v1878 = vsel %vm233, %v1870, 0
  %v1881 = vsel %vm233, %v1871, 0
  %v1884 = vsel %vm233, %v1872, 0
  %v1887 = vsel %vm233, %v1873, 0
  %1889 = vmatprep.subr.bf16.mxu0 0
  %1890 = vmatpush1.bf16.msra.mxu0 0
  %1891 = vmatprep.subr.bf16.mxu0 0
  %1892 = vmatpush1.bf16.msra.mxu0 0
  %1893 = vmatprep.subr.bf16.mxu0 0
  %1894 = vmatpush1.bf16.msra.mxu0 0
  %1895 = vmatprep.subr.bf16.mxu0 0
  %1896 = vmatpush1.bf16.msra.mxu0 0
  %1897 = vmatprep.subr.bf16.mxu0 0
  %1898 = vmatpush1.bf16.msra.mxu0 0
  %1899 = vmatprep.subr.bf16.mxu0 0
  %1900 = vmatpush1.bf16.msra.mxu0 0
  %1901 = vmatprep.subr.bf16.mxu0 0
  %1902 = vmatpush1.bf16.msra.mxu0 0
  %1903 = vmatprep.subr.bf16.mxu0 %v1881
  %1904 = vmatpush1.bf16.msra.mxu0 %v1878
  %1905 = vmatprep.subr.bf16.mxu0 0
  %1906 = vmatpush2.bf16.msra.mxu0 0
  %1907 = vmatprep.subr.bf16.mxu0 0
  %1908 = vmatpush2.bf16.msra.mxu0 0
  %1909 = vmatprep.subr.bf16.mxu0 0
  %1910 = vmatpush2.bf16.msra.mxu0 0
  %1911 = vmatprep.subr.bf16.mxu0 0
  %1912 = vmatpush2.bf16.msra.mxu0 0
  %1913 = vmatprep.subr.bf16.mxu0 0
  %1914 = vmatpush2.bf16.msra.mxu0 0
  %1915 = vmatprep.subr.bf16.mxu0 0
  %1916 = vmatpush2.bf16.msra.mxu0 0
  %1917 = vmatprep.subr.bf16.mxu0 0
  %1918 = vmatpush2.bf16.msra.mxu0 0
  %1919 = vmatprep.subr.bf16.mxu0 0
  %1920 = vmatpush2.bf16.msra.mxu0 0
  %1921 = vmatprep.mubr.bf16.mxu0 0
  %1922 = vmatmul.mubr.bf16.gmra.mxu0 %v1875
  %v1923 = vpop.f32.mrf.mxu0
  %v1924 = vadd.f32 0.0, %v1923
  %v1925 = vpop.f32.mrf.mxu0
  %v1926 = vadd.f32 0.0, %v1925
  %v1927 = vpop.f32.mrf.mxu0
  %v1928 = vpop.f32.mrf.mxu0
  %1929 = vdwg.mxu0
  %1930 = vmatprep.subr.bf16.mxu0 0
  %1931 = vmatpush1.bf16.msra.mxu0 0
  %1932 = vmatprep.subr.bf16.mxu0 0
  %1933 = vmatpush1.bf16.msra.mxu0 0
  %1934 = vmatprep.subr.bf16.mxu0 0
  %1935 = vmatpush1.bf16.msra.mxu0 0
  %1936 = vmatprep.subr.bf16.mxu0 0
  %1937 = vmatpush1.bf16.msra.mxu0 0
  %1938 = vmatprep.subr.bf16.mxu0 0
  %1939 = vmatpush1.bf16.msra.mxu0 0
  %1940 = vmatprep.subr.bf16.mxu0 0
  %1941 = vmatpush1.bf16.msra.mxu0 0
  %1942 = vmatprep.subr.bf16.mxu0 0
  %1943 = vmatpush1.bf16.msra.mxu0 0
  %1944 = vmatprep.subr.bf16.mxu0 %v1887
  %1945 = vmatpush1.bf16.msra.mxu0 %v1884
  %1946 = vmatprep.subr.bf16.mxu0 0
  %1947 = vmatpush2.bf16.msra.mxu0 0
  %1948 = vmatprep.subr.bf16.mxu0 0
  %1949 = vmatpush2.bf16.msra.mxu0 0
  %1950 = vmatprep.subr.bf16.mxu0 0
  %1951 = vmatpush2.bf16.msra.mxu0 0
  %1952 = vmatprep.subr.bf16.mxu0 0
  %1953 = vmatpush2.bf16.msra.mxu0 0
  %1954 = vmatprep.subr.bf16.mxu0 0
  %1955 = vmatpush2.bf16.msra.mxu0 0
  %1956 = vmatprep.subr.bf16.mxu0 0
  %1957 = vmatpush2.bf16.msra.mxu0 0
  %1958 = vmatprep.subr.bf16.mxu0 0
  %1959 = vmatpush2.bf16.msra.mxu0 0
  %1960 = vmatprep.subr.bf16.mxu0 0
  %1961 = vmatpush2.bf16.msra.mxu0 0
  %1962 = vmatprep.mubr.bf16.mxu0 0
  %1963 = vmatmul.mubr.bf16.gmra.mxu0 %v1875
  %v1964 = vpop.f32.mrf.mxu0
  %v1965 = vadd.f32 0.0, %v1964
  %v1966 = vpop.f32.mrf.mxu0
  %v1967 = vadd.f32 0.0, %v1966
  %v1968 = vpop.f32.mrf.mxu0
  %v1969 = vpop.f32.mrf.mxu0
  %1970 = vdwg.mxu0
  %v1971 = vadd.f32 %v1740, %v1924
  %v1972 = vadd.f32 %v1741, %v1926
  %v1973 = vadd.f32 %v1742, %v1965
  %v1974 = vadd.f32 %v1743, %v1967
  %v1975 = vadd.f32 %v1971, %v1972
  %v1976 = vadd.f32 %v1975, %v1973
  %v1977 = vadd.f32 %v1976, %v1974
  %1978 = vadd.xlane.f32.xlu0 %v1977
  %v1979 = vpop.xlane.xlu0 %1978
  %v1980 = vmul.f32 %v1971, %v1971
  %v1981 = vmul.f32 %v1972, %v1972
  %v1982 = vmul.f32 %v1973, %v1973
  %v1983 = vmul.f32 %v1974, %v1974
  %v1984 = vadd.f32 %v1980, %v1981
  %v1985 = vadd.f32 %v1984, %v1982
  %v1986 = vadd.f32 %v1985, %v1983
  %1987 = vadd.xlane.f32.xlu0 %v1986
  %v1988 = vpop.xlane.xlu0 %1987
  %v1989 = vmul.f32 %v1979, 0.001953125
  %v1990 = vmul.f32 %v1988, 0.001953125
  %v1991 = vmul.f32 %v1989, %v1989
  %v1992 = vsub.f32 %v1990, %v1991
  %v1993 = vadd.f32 %v1992, 1e-05
  %v1994 = vrsqrt.pop %v1993
  %v1995 = vld [vmem:[%s3] sm:$0xff]
  %v1996 = vmul.f32 %v1995, %v1994
  %v1997 = vld [vmem:[%s4] sm:$0xff]
  %v1998 = vmul.f32 %v1989, %v1996
  %v1999 = vsub.f32 %v1997, %v1998
  %2001 = vset.pattern.permute.xlu0 0
  %2002 = vperm.xlu0 %2001, %v1996
  %v2003 = vpop.permute.xlu0 %2002
  %v2005 = vmul.f32 %v1971, %v2003
  %v2006 = vmul.f32 %v1972, %v2003
  %v2007 = vmul.f32 %v1973, %v2003
  %v2008 = vmul.f32 %v1974, %v2003
  %2010 = vset.pattern.permute.xlu0 0
  %2011 = vperm.xlu0 %2010, %v1999
  %v2012 = vpop.permute.xlu0 %2011
  %v2014 = vadd.f32 %v2005, %v2012
  %v2015 = vadd.f32 %v2006, %v2012
  %v2016 = vadd.f32 %v2007, %v2012
  %v2017 = vadd.f32 %v2008, %v2012
  %v2018 = vmax.f32 %v2014, 0.0
  %v2019 = vmax.f32 %v2015, 0.0
  %v2020 = vmax.f32 %v2016, 0.0
  %v2021 = vmax.f32 %v2017, 0.0
  %2022 = vst [vmem:[%s5] sm:$0xff] %v2018
  %2023 = vst [vmem:[%s5 + $0x8] sm:$0xff] %v2019
  %2024 = vst [vmem:[%s5 + $0x10] sm:$0xff] %v2020
  %2025 = vst [vmem:[%s5 + $0x18] sm:$0xff] %v2021
  // Predicated region
  $region22: #{conv_forward.1} parent=0 // pred_check
    _
  $region23: #{conv_forward.1} parent=0 // pred_check_branch
    %2027 = sbr.rel (0) target = $region25
  $region24: #{conv_forward.1} parent=0 // pred_region
    _
  $region25: #{conv_forward.1} parent=0 // pred_fallthru
    _
  // Predicated region
  $region26: #{conv_forward.1} parent=0 // pred_check
    _
  $region27: #{conv_forward.1} parent=0 // pred_check_branch
    %2029 = sbr.rel (0) target = $region29
  $region28: #{conv_forward.1} parent=0 // pred_region
    _
  $region29: #{conv_forward.1} parent=0 // pred_fallthru
    _

</llo_original>
